<compile_context>
chip_gen: v5e
topology: v5e:2x2
jax: 0.10.0
libtpu: 0.0.40
codegen_flags: <defaults>
</compile_context>

<pallas_src>
import functools

import jax
import jax.numpy as jnp
from jax.experimental import pallas as pl
from jax.experimental.pallas import tpu as pltpu


def _round_up(v, m):
    return (v + m - 1) // m * m


# --------------------------------------------------------------------------------------
# Kernels
# --------------------------------------------------------------------------------------
def _gcn_layer_kernel(x_ref, adj_ref, w_ref, out_ref, acc_ref, *, act):
    """One (row-tile i, col-tile k) step of act(adj @ (x @ W)).

    x_ref   : (TK, FIN_PAD)       node features for column tile k
    adj_ref : (TM, TK)            adjacency tile (i, k)
    w_ref   : (FIN_PAD, FOUT_PAD) full weight, resident across the grid
    out_ref : (TM, FOUT_PAD)      output row tile i (written at last k)
    acc_ref : (TM, FOUT_PAD)      f32 accumulator scratch
    """
    k = pl.program_id(1)

    @pl.when(k == 0)
    def _():
        acc_ref[...] = jnp.zeros_like(acc_ref)

    # Feature transform for this node tile: bf16 MXU inputs, f32 accumulation.
    s_k = jnp.dot(x_ref[...].astype(jnp.bfloat16),
                  w_ref[...].astype(jnp.bfloat16),
                  preferred_element_type=jnp.float32)
    # Aggregate over the graph: adj tile @ transformed features.
    acc_ref[...] += jnp.dot(adj_ref[...].astype(jnp.bfloat16),
                            s_k.astype(jnp.bfloat16),
                            preferred_element_type=jnp.float32)

    @pl.when(k == pl.num_programs(1) - 1)
    def _():
        out_ref[...] = act(acc_ref[...]).astype(out_ref.dtype)


def _gcn_heads_kernel(x_ref, adj_ref, w_ref, eps_ref, out_ref, acc_ref, *,
                      outd, slab_width):
    """Fused output heads + reparameterize.

    Accumulates o12 = adj @ (h2 @ [W3 | W4]) in one wide MXU pass, then computes
    recon = eps * exp(o2) + o1 (f32 elementwise) and writes a single lane-dense
    slab [o1 | o2 | recon | 0-pad] of width `slab_width`.
    """
    k = pl.program_id(1)

    @pl.when(k == 0)
    def _():
        acc_ref[...] = jnp.zeros_like(acc_ref)

    s_k = jnp.dot(x_ref[...].astype(jnp.bfloat16),
                  w_ref[...].astype(jnp.bfloat16),
                  preferred_element_type=jnp.float32)
    acc_ref[...] += jnp.dot(adj_ref[...].astype(jnp.bfloat16),
                            s_k.astype(jnp.bfloat16),
                            preferred_element_type=jnp.float32)

    @pl.when(k == pl.num_programs(1) - 1)
    def _():
        o12 = acc_ref[...]                       # (TM, HEADS_PAD) f32
        o1 = o12[:, :outd]
        o2 = o12[:, outd:2 * outd]
        recon = eps_ref[...] * jnp.exp(o2) + o1  # f32 elementwise (EUP exp)
        pieces = [o1, o2, recon]
        pad = slab_width - 3 * outd
        if pad > 0:
            pieces.append(jnp.zeros((o1.shape[0], pad), jnp.float32))
        out_ref[...] = jnp.concatenate(pieces, axis=-1).astype(out_ref.dtype)


# --------------------------------------------------------------------------------------
# pallas_call wrapper for one tiled GCN stage
# --------------------------------------------------------------------------------------
def _tiled_gcn_call(kernel, x_p, adj_p, w_p, extra_inputs, extra_specs,
                    out_width, acc_width, tile_m, tile_k):
    n_pad = adj_p.shape[0]
    fin = x_p.shape[1]
    fout = w_p.shape[1]
    grid = (n_pad // tile_m, n_pad // tile_k)

    in_specs = [
        pl.BlockSpec((tile_k, fin), lambda i, k: (k, 0)),      # features: column tile k
        pl.BlockSpec((tile_m, tile_k), lambda i, k: (i, k)),   # adjacency tile (i, k)
        pl.BlockSpec((fin, fout), lambda i, k: (0, 0)),        # weight: resident
    ] + list(extra_specs)

    return pl.pallas_call(
        kernel,
        out_shape=jax.ShapeDtypeStruct((n_pad, out_width), jnp.float32),
        grid_spec=pltpu.PrefetchScalarGridSpec(
            num_scalar_prefetch=0,
            grid=grid,
            in_specs=in_specs,
            out_specs=pl.BlockSpec((tile_m, out_width), lambda i, k: (i, 0)),
            scratch_shapes=[pltpu.VMEM((tile_m, acc_width), jnp.float32)],
        ),
        compiler_params=pltpu.CompilerParams(
            dimension_semantics=("parallel", "arbitrary")),
    )(x_p, adj_p, w_p, *extra_inputs)


# --------------------------------------------------------------------------------------
# Full forward (GCN path of Graph.forward, use_GAT=False)
# --------------------------------------------------------------------------------------
def graph_forward(x, adj, w1, w2, w3, w4, eps):
    """x: (N, inputdim), adj: (N, N) dense normalized adjacency, Wi: GCN weights,
    eps: (N, outputdim) std-normal sample for reparameterize."""
    n, inputdim = x.shape
    hid1 = w1.shape[1]
    hid2 = w2.shape[1]
    outd = w3.shape[1]

    # ---- node / feature padding: lane-dense (multiples of 128), node dim to tile multiple
    if n <= 512:
        n_pad = _round_up(n, 128)
        tile_m = tile_k = n_pad            # single tile per axis for small graphs
    else:
        tile_m, tile_k = 256, 512          # ~1 MiB bf16 adj tiles double-buffered (fits v7x)
        n_pad = _round_up(n, 512)

    fin_pad = _round_up(inputdim, 128)
    h1_pad = _round_up(hid1, 128)
    h2_pad = _round_up(hid2, 128)
    heads_pad = _round_up(2 * outd, 128)   # fused [W3 | W4] output width
    slab_pad = _round_up(3 * outd, 128)    # packed [o1 | o2 | recon] output width

    f32 = jnp.float32
    x_p = jnp.pad(x.astype(f32),
                  ((0, n_pad - n), (0, fin_pad - inputdim))).astype(jnp.bfloat16)
    adj_p = jnp.pad(adj.astype(f32),
                    ((0, n_pad - n), (0, n_pad - n))).astype(jnp.bfloat16)
    w1_p = jnp.pad(w1.astype(f32),
                   ((0, fin_pad - inputdim), (0, h1_pad - hid1))).astype(jnp.bfloat16)
    w2_p = jnp.pad(w2.astype(f32),
                   ((0, h1_pad - hid1), (0, h2_pad - hid2))).astype(jnp.bfloat16)
    w34 = jnp.concatenate([w3, w4], axis=1)                       # fused output heads
    w34_p = jnp.pad(w34.astype(f32),
                    ((0, h2_pad - hid2), (0, heads_pad - 2 * outd))).astype(jnp.bfloat16)
    eps_p = jnp.pad(eps.astype(f32), ((0, n_pad - n), (0, 0)))

    # Layer 1: tanh(adj @ (x @ W1))
    h1_p = _tiled_gcn_call(
        functools.partial(_gcn_layer_kernel, act=jnp.tanh),
        x_p, adj_p, w1_p, (), (), h1_pad, h1_pad, tile_m, tile_k)

    # Layer 2: relu(adj @ (h1 @ W2))
    h2_p = _tiled_gcn_call(
        functools.partial(_gcn_layer_kernel, act=lambda v: jnp.maximum(v, 0.0)),
        h1_p, adj_p, w2_p, (), (), h2_pad, h2_pad, tile_m, tile_k)

    # Fused heads + reparameterize: o12 = adj @ (h2 @ [W3|W4]); recon = eps*exp(o2)+o1
    eps_spec = pl.BlockSpec((tile_m, outd), lambda i, k: (i, 0))
    slab = _tiled_gcn_call(
        functools.partial(_gcn_heads_kernel, outd=outd, slab_width=slab_pad),
        h2_p, adj_p, w34_p, (eps_p,), (eps_spec,), slab_pad, heads_pad, tile_m, tile_k)

    h1 = h1_p[:n, :hid1]
    h2 = h2_p[:n, :hid2]
    o1 = slab[:n, :outd]
    o2 = slab[:n, outd:2 * outd]
    recon = slab[:n, 2 * outd:3 * outd]
    return h1, h2, recon, (o1, o2)


def _glorot(key, fan_in, fan_out):
    # Matches gae-pytorch GraphConvolution glorot-uniform init (deterministic via key).
    limit = jnp.sqrt(6.0 / (fan_in + fan_out))
    return jax.random.uniform(key, (fan_in, fan_out), jnp.float32, -limit, limit)


if __name__ == "__main__":
    # Small shapes consistent with the module constructor.
    N = 32            # number of graph nodes
    inputdim = 64
    hid_embed1 = 32
    hid_embed2 = 32
    outputdim = 16

    root = jax.random.PRNGKey(0)
    kx, kadj, k1, k2, k3, k4, keps = jax.random.split(root, 7)

    x = jax.random.normal(kx, (N, inputdim), jnp.float32)

    # Symmetric normalized dense adjacency (as produced upstream of a GAE-style model).
    a = (jax.random.uniform(kadj, (N, N)) < 0.2).astype(jnp.float32)
    a = jnp.maximum(a, a.T) + jnp.eye(N, dtype=jnp.float32)          # symmetrize + self loops
    dinv = 1.0 / jnp.sqrt(a.sum(axis=1))
    adj = a * dinv[:, None] * dinv[None, :]

    w1 = _glorot(k1, inputdim, hid_embed1)
    w2 = _glorot(k2, hid_embed1, hid_embed2)
    w3 = _glorot(k3, hid_embed2, outputdim)
    w4 = _glorot(k4, hid_embed2, outputdim)

    # eps ~ N(0,1) for reparameterize (generated outside the kernel; deterministic here).
    eps = jax.random.normal(keps, (N, outputdim), jnp.float32)

    fwd = jax.jit(graph_forward)
    h1, h2, recon, (o1, o2) = fwd(x, adj, w1, w2, w3, w4, eps)
    jax.block_until_ready((h1, h2, recon, o1, o2))

    # ---- Cross-check 1: bf16-matched pure-JAX reference (same MXU-input casting policy).
    def ref_layer(xin, w, act):
        s = jnp.dot(xin.astype(jnp.bfloat16), w.astype(jnp.bfloat16),
                    preferred_element_type=jnp.float32)
        z = jnp.dot(adj.astype(jnp.bfloat16), s.astype(jnp.bfloat16),
                    preferred_element_type=jnp.float32)
        return act(z)

    rh1 = ref_layer(x, w1, jnp.tanh)
    rh2 = ref_layer(rh1, w2, lambda v: jnp.maximum(v, 0.0))
    ro12 = ref_layer(rh2, jnp.concatenate([w3, w4], axis=1), lambda v: v)
    ro1, ro2 = ro12[:, :outputdim], ro12[:, outputdim:]
    rrecon = eps * jnp.exp(ro2) + ro1
    assert jnp.allclose(h1, rh1, atol=1e-2, rtol=1e-2)
    assert jnp.allclose(h2, rh2, atol=1e-2, rtol=1e-2)
    assert jnp.allclose(o1, ro1, atol=1e-2, rtol=1e-2)
    assert jnp.allclose(o2, ro2, atol=1e-2, rtol=1e-2)
    assert jnp.allclose(recon, rrecon, atol=2e-2, rtol=2e-2)

    # ---- Cross-check 2: full-f32 reference (loose tolerance: bf16 MXU inputs by design).
    ref_h1 = jnp.tanh(adj @ (x @ w1))
    ref_h2 = jax.nn.relu(adj @ (ref_h1 @ w2))
    ref_o1 = adj @ (ref_h2 @ w3)
    ref_o2 = adj @ (ref_h2 @ w4)
    ref_recon = eps * jnp.exp(ref_o2) + ref_o1
    assert jnp.allclose(h1, ref_h1, atol=7e-2, rtol=7e-2)
    assert jnp.allclose(h2, ref_h2, atol=7e-2, rtol=7e-2)
    assert jnp.allclose(o1, ref_o1, atol=7e-2, rtol=7e-2)
    assert jnp.allclose(o2, ref_o2, atol=7e-2, rtol=7e-2)
    assert jnp.allclose(recon, ref_recon, atol=1e-1, rtol=1e-1)

    print("KERNEL_OK")
</pallas_src>

<mosaic_0001>
module attributes {stable_mosaic.version = 11 : i64} {
  func.func @_gcn_layer_kernel(%arg0: i32, %arg1: i32, %arg2: memref<128x128xbf16, #tpu.memory_space<vmem>>, %arg3: memref<128x128xbf16, #tpu.memory_space<vmem>>, %arg4: memref<128x128xbf16, #tpu.memory_space<vmem>>, %arg5: memref<128x128xf32, #tpu.memory_space<vmem>>, %arg6: memref<128x128xf32, #tpu.memory_space<vmem>>) attributes {dimension_semantics = [#tpu.dimension_semantics<parallel>, #tpu.dimension_semantics<arbitrary>], iteration_bounds = array<i64: 1, 1>, scalar_prefetch = 0 : i64, scratch_operands = 1 : i64, tpu.core_type = #tpu.core_type<tc>, window_params = [{transform_indices = @transform_0, window_bounds = array<i64: 128, 128>}, {transform_indices = @transform_1, window_bounds = array<i64: 128, 128>}, {pipeline_mode = #tpu.pipeline_mode<synchronous>, transform_indices = @transform_2, window_bounds = array<i64: 128, 128>}, {transform_indices = @transform_3, window_bounds = array<i64: 128, 128>}]} {
    %c0_i32 = arith.constant 0 : i32
    %0 = arith.cmpi eq, %arg1, %c0_i32 : i32
    %1 = arith.extui %0 : i1 to i32
    %c0_i32_0 = arith.constant 0 : i32
    %2 = arith.cmpi ne, %1, %c0_i32_0 : i32
    scf.if %2 {
      %cst_13 = arith.constant 0.000000e+00 : f32
      %15 = vector.broadcast %cst_13 : f32 to vector<128x128xf32>
      %c0_14 = arith.constant 0 : index
      %c0_15 = arith.constant 0 : index
      %16 = vector.load %arg6[%c0_14, %c0_15] : memref<128x128xf32, #tpu.memory_space<vmem>>, vector<128x128xf32>
      tpu.vector_store %arg6[%c0_14, %c0_15], %15 {strides = array<i32>} : memref<128x128xf32, #tpu.memory_space<vmem>>, vector<128x128xf32>,
    } else {
    }
    %c0 = arith.constant 0 : index
    %c0_1 = arith.constant 0 : index
    %3 = vector.load %arg2[%c0, %c0_1] : memref<128x128xbf16, #tpu.memory_space<vmem>>, vector<128x128xbf16>
    %c0_2 = arith.constant 0 : index
    %c0_3 = arith.constant 0 : index
    %4 = vector.load %arg4[%c0_2, %c0_3] : memref<128x128xbf16, #tpu.memory_space<vmem>>, vector<128x128xbf16>
    %cst = arith.constant dense<0.000000e+00> : vector<128x128xf32>
    %5 = tpu.matmul %3, %4, %cst {dimension_numbers = #tpu.dot_dimension_numbers<[1], [0], [0], [1], [0, 0, 1, 1], [], []>} : vector<128x128xbf16>, vector<128x128xbf16>, vector<128x128xf32> -> vector<128x128xf32>
    %c0_4 = arith.constant 0 : index
    %c0_5 = arith.constant 0 : index
    %6 = vector.load %arg6[%c0_4, %c0_5] : memref<128x128xf32, #tpu.memory_space<vmem>>, vector<128x128xf32>
    %c0_6 = arith.constant 0 : index
    %c0_7 = arith.constant 0 : index
    %7 = vector.load %arg3[%c0_6, %c0_7] : memref<128x128xbf16, #tpu.memory_space<vmem>>, vector<128x128xbf16>
    %8 = arith.truncf %5 : vector<128x128xf32> to vector<128x128xbf16>
    %cst_8 = arith.constant dense<0.000000e+00> : vector<128x128xf32>
    %9 = tpu.matmul %7, %8, %cst_8 {dimension_numbers = #tpu.dot_dimension_numbers<[1], [0], [0], [1], [0, 0, 1, 1], [], []>} : vector<128x128xbf16>, vector<128x128xbf16>, vector<128x128xf32> -> vector<128x128xf32>
    %10 = arith.addf %6, %9 : vector<128x128xf32>
    %c0_9 = arith.constant 0 : index
    %c0_10 = arith.constant 0 : index
    %11 = vector.load %arg6[%c0_9, %c0_10] : memref<128x128xf32, #tpu.memory_space<vmem>>, vector<128x128xf32>
    tpu.vector_store %arg6[%c0_9, %c0_10], %10 {strides = array<i32>} : memref<128x128xf32, #tpu.memory_space<vmem>>, vector<128x128xf32>,
    %c0_i32_11 = arith.constant 0 : i32
    %12 = arith.cmpi eq, %arg1, %c0_i32_11 : i32
    %13 = arith.extui %12 : i1 to i32
    %c0_i32_12 = arith.constant 0 : i32
    %14 = arith.cmpi ne, %13, %c0_i32_12 : i32
    scf.if %14 {
      %c0_13 = arith.constant 0 : index
      %c0_14 = arith.constant 0 : index
      %15 = vector.load %arg6[%c0_13, %c0_14] : memref<128x128xf32, #tpu.memory_space<vmem>>, vector<128x128xf32>
      %16 = math.tanh %15 : vector<128x128xf32>
      %c0_15 = arith.constant 0 : index
      %c0_16 = arith.constant 0 : index
      %17 = vector.load %arg5[%c0_15, %c0_16] : memref<128x128xf32, #tpu.memory_space<vmem>>, vector<128x128xf32>
      tpu.vector_store %arg5[%c0_15, %c0_16], %16 {strides = array<i32>} : memref<128x128xf32, #tpu.memory_space<vmem>>, vector<128x128xf32>,
    } else {
    }
    return
  }
  func.func @transform_0(%arg0: i32, %arg1: i32) -> (i32, i32) {
    %c0_i32 = arith.constant 0 : i32
    %c0_i32_0 = arith.constant 0 : i32
    return %arg1, %c0_i32 : i32, i32
  }
  func.func @transform_1(%arg0: i32, %arg1: i32) -> (i32, i32) {
    %c0_i32 = arith.constant 0 : i32
    return %arg0, %arg1 : i32, i32
  }
  func.func @transform_2(%arg0: i32, %arg1: i32) -> (i32, i32) {
    %c0_i32 = arith.constant 0 : i32
    %c0_i32_0 = arith.constant 0 : i32
    %c0_i32_1 = arith.constant 0 : i32
    return %c0_i32, %c0_i32_0 : i32, i32
  }
  func.func @transform_3(%arg0: i32, %arg1: i32) -> (i32, i32) {
    %c0_i32 = arith.constant 0 : i32
    %c0_i32_0 = arith.constant 0 : i32
    return %arg0, %c0_i32 : i32, i32
  }
}

module attributes {stable_mosaic.version = 11 : i64} {
  func.func @_gcn_layer_kernel(%arg0: i32, %arg1: i32, %arg2: memref<128x128xf32, #tpu.memory_space<vmem>>, %arg3: memref<128x128xbf16, #tpu.memory_space<vmem>>, %arg4: memref<128x128xbf16, #tpu.memory_space<vmem>>, %arg5: memref<128x128xf32, #tpu.memory_space<vmem>>, %arg6: memref<128x128xf32, #tpu.memory_space<vmem>>) attributes {dimension_semantics = [#tpu.dimension_semantics<parallel>, #tpu.dimension_semantics<arbitrary>], iteration_bounds = array<i64: 1, 1>, scalar_prefetch = 0 : i64, scratch_operands = 1 : i64, tpu.core_type = #tpu.core_type<tc>, window_params = [{transform_indices = @transform_0, window_bounds = array<i64: 128, 128>}, {transform_indices = @transform_1, window_bounds = array<i64: 128, 128>}, {pipeline_mode = #tpu.pipeline_mode<synchronous>, transform_indices = @transform_2, window_bounds = array<i64: 128, 128>}, {transform_indices = @transform_3, window_bounds = array<i64: 128, 128>}]} {
    %c0_i32 = arith.constant 0 : i32
    %0 = arith.cmpi eq, %arg1, %c0_i32 : i32
    %1 = arith.extui %0 : i1 to i32
    %c0_i32_0 = arith.constant 0 : i32
    %2 = arith.cmpi ne, %1, %c0_i32_0 : i32
    scf.if %2 {
      %cst_13 = arith.constant 0.000000e+00 : f32
      %16 = vector.broadcast %cst_13 : f32 to vector<128x128xf32>
      %c0_14 = arith.constant 0 : index
      %c0_15 = arith.constant 0 : index
      %17 = vector.load %arg6[%c0_14, %c0_15] : memref<128x128xf32, #tpu.memory_space<vmem>>, vector<128x128xf32>
      tpu.vector_store %arg6[%c0_14, %c0_15], %16 {strides = array<i32>} : memref<128x128xf32, #tpu.memory_space<vmem>>, vector<128x128xf32>,
    } else {
    }
    %c0 = arith.constant 0 : index
    %c0_1 = arith.constant 0 : index
    %3 = vector.load %arg2[%c0, %c0_1] : memref<128x128xf32, #tpu.memory_space<vmem>>, vector<128x128xf32>
    %4 = arith.truncf %3 : vector<128x128xf32> to vector<128x128xbf16>
    %c0_2 = arith.constant 0 : index
    %c0_3 = arith.constant 0 : index
    %5 = vector.load %arg4[%c0_2, %c0_3] : memref<128x128xbf16, #tpu.memory_space<vmem>>, vector<128x128xbf16>
    %cst = arith.constant dense<0.000000e+00> : vector<128x128xf32>
    %6 = tpu.matmul %4, %5, %cst {dimension_numbers = #tpu.dot_dimension_numbers<[1], [0], [0], [1], [0, 0, 1, 1], [], []>} : vector<128x128xbf16>, vector<128x128xbf16>, vector<128x128xf32> -> vector<128x128xf32>
    %c0_4 = arith.constant 0 : index
    %c0_5 = arith.constant 0 : index
    %7 = vector.load %arg6[%c0_4, %c0_5] : memref<128x128xf32, #tpu.memory_space<vmem>>, vector<128x128xf32>
    %c0_6 = arith.constant 0 : index
    %c0_7 = arith.constant 0 : index
    %8 = vector.load %arg3[%c0_6, %c0_7] : memref<128x128xbf16, #tpu.memory_space<vmem>>, vector<128x128xbf16>
    %9 = arith.truncf %6 : vector<128x128xf32> to vector<128x128xbf16>
    %cst_8 = arith.constant dense<0.000000e+00> : vector<128x128xf32>
    %10 = tpu.matmul %8, %9, %cst_8 {dimension_numbers = #tpu.dot_dimension_numbers<[1], [0], [0], [1], [0, 0, 1, 1], [], []>} : vector<128x128xbf16>, vector<128x128xbf16>, vector<128x128xf32> -> vector<128x128xf32>
    %11 = arith.addf %7, %10 : vector<128x128xf32>
    %c0_9 = arith.constant 0 : index
    %c0_10 = arith.constant 0 : index
    %12 = vector.load %arg6[%c0_9, %c0_10] : memref<128x128xf32, #tpu.memory_space<vmem>>, vector<128x128xf32>
    tpu.vector_store %arg6[%c0_9, %c0_10], %11 {strides = array<i32>} : memref<128x128xf32, #tpu.memory_space<vmem>>, vector<128x128xf32>,
    %c0_i32_11 = arith.constant 0 : i32
    %13 = arith.cmpi eq, %arg1, %c0_i32_11 : i32
    %14 = arith.extui %13 : i1 to i32
    %c0_i32_12 = arith.constant 0 : i32
    %15 = arith.cmpi ne, %14, %c0_i32_12 : i32
    scf.if %15 {
      %c0_13 = arith.constant 0 : index
      %c0_14 = arith.constant 0 : index
      %16 = vector.load %arg6[%c0_13, %c0_14] : memref<128x128xf32, #tpu.memory_space<vmem>>, vector<128x128xf32>
      %cst_15 = arith.constant 0.000000e+00 : f32
      %17 = vector.broadcast %cst_15 : f32 to vector<128x128xf32>
      %18 = arith.maximumf %16, %17 : vector<128x128xf32>
      %c0_16 = arith.constant 0 : index
      %c0_17 = arith.constant 0 : index
      %19 = vector.load %arg5[%c0_16, %c0_17] : memref<128x128xf32, #tpu.memory_space<vmem>>, vector<128x128xf32>
      tpu.vector_store %arg5[%c0_16, %c0_17], %18 {strides = array<i32>} : memref<128x128xf32, #tpu.memory_space<vmem>>, vector<128x128xf32>,
    } else {
    }
    return
  }
  func.func @transform_0(%arg0: i32, %arg1: i32) -> (i32, i32) {
    %c0_i32 = arith.constant 0 : i32
    %c0_i32_0 = arith.constant 0 : i32
    return %arg1, %c0_i32 : i32, i32
  }
  func.func @transform_1(%arg0: i32, %arg1: i32) -> (i32, i32) {
    %c0_i32 = arith.constant 0 : i32
    return %arg0, %arg1 : i32, i32
  }
  func.func @transform_2(%arg0: i32, %arg1: i32) -> (i32, i32) {
    %c0_i32 = arith.constant 0 : i32
    %c0_i32_0 = arith.constant 0 : i32
    %c0_i32_1 = arith.constant 0 : i32
    return %c0_i32, %c0_i32_0 : i32, i32
  }
  func.func @transform_3(%arg0: i32, %arg1: i32) -> (i32, i32) {
    %c0_i32 = arith.constant 0 : i32
    %c0_i32_0 = arith.constant 0 : i32
    return %arg0, %c0_i32 : i32, i32
  }
}

module attributes {stable_mosaic.version = 11 : i64} {
  func.func @_gcn_heads_kernel(%arg0: i32, %arg1: i32, %arg2: memref<128x128xf32, #tpu.memory_space<vmem>>, %arg3: memref<128x128xbf16, #tpu.memory_space<vmem>>, %arg4: memref<128x128xbf16, #tpu.memory_space<vmem>>, %arg5: memref<128x16xf32, #tpu.memory_space<vmem>>, %arg6: memref<128x128xf32, #tpu.memory_space<vmem>>, %arg7: memref<128x128xf32, #tpu.memory_space<vmem>>) attributes {dimension_semantics = [#tpu.dimension_semantics<parallel>, #tpu.dimension_semantics<arbitrary>], iteration_bounds = array<i64: 1, 1>, scalar_prefetch = 0 : i64, scratch_operands = 1 : i64, tpu.core_type = #tpu.core_type<tc>, window_params = [{transform_indices = @transform_0, window_bounds = array<i64: 128, 128>}, {transform_indices = @transform_1, window_bounds = array<i64: 128, 128>}, {pipeline_mode = #tpu.pipeline_mode<synchronous>, transform_indices = @transform_2, window_bounds = array<i64: 128, 128>}, {transform_indices = @transform_3, window_bounds = array<i64: 128, 16>}, {transform_indices = @transform_4, window_bounds = array<i64: 128, 128>}]} {
    %c0_i32 = arith.constant 0 : i32
    %0 = arith.cmpi eq, %arg1, %c0_i32 : i32
    %1 = arith.extui %0 : i1 to i32
    %c0_i32_0 = arith.constant 0 : i32
    %2 = arith.cmpi ne, %1, %c0_i32_0 : i32
    scf.if %2 {
      %cst_13 = arith.constant 0.000000e+00 : f32
      %16 = vector.broadcast %cst_13 : f32 to vector<128x128xf32>
      %c0_14 = arith.constant 0 : index
      %c0_15 = arith.constant 0 : index
      %17 = vector.load %arg7[%c0_14, %c0_15] : memref<128x128xf32, #tpu.memory_space<vmem>>, vector<128x128xf32>
      tpu.vector_store %arg7[%c0_14, %c0_15], %16 {strides = array<i32>} : memref<128x128xf32, #tpu.memory_space<vmem>>, vector<128x128xf32>,
    } else {
    }
    %c0 = arith.constant 0 : index
    %c0_1 = arith.constant 0 : index
    %3 = vector.load %arg2[%c0, %c0_1] : memref<128x128xf32, #tpu.memory_space<vmem>>, vector<128x128xf32>
    %4 = arith.truncf %3 : vector<128x128xf32> to vector<128x128xbf16>
    %c0_2 = arith.constant 0 : index
    %c0_3 = arith.constant 0 : index
    %5 = vector.load %arg4[%c0_2, %c0_3] : memref<128x128xbf16, #tpu.memory_space<vmem>>, vector<128x128xbf16>
    %cst = arith.constant dense<0.000000e+00> : vector<128x128xf32>
    %6 = tpu.matmul %4, %5, %cst {dimension_numbers = #tpu.dot_dimension_numbers<[1], [0], [0], [1], [0, 0, 1, 1], [], []>} : vector<128x128xbf16>, vector<128x128xbf16>, vector<128x128xf32> -> vector<128x128xf32>
    %c0_4 = arith.constant 0 : index
    %c0_5 = arith.constant 0 : index
    %7 = vector.load %arg7[%c0_4, %c0_5] : memref<128x128xf32, #tpu.memory_space<vmem>>, vector<128x128xf32>
    %c0_6 = arith.constant 0 : index
    %c0_7 = arith.constant 0 : index
    %8 = vector.load %arg3[%c0_6, %c0_7] : memref<128x128xbf16, #tpu.memory_space<vmem>>, vector<128x128xbf16>
    %9 = arith.truncf %6 : vector<128x128xf32> to vector<128x128xbf16>
    %cst_8 = arith.constant dense<0.000000e+00> : vector<128x128xf32>
    %10 = tpu.matmul %8, %9, %cst_8 {dimension_numbers = #tpu.dot_dimension_numbers<[1], [0], [0], [1], [0, 0, 1, 1], [], []>} : vector<128x128xbf16>, vector<128x128xbf16>, vector<128x128xf32> -> vector<128x128xf32>
    %11 = arith.addf %7, %10 : vector<128x128xf32>
    %c0_9 = arith.constant 0 : index
    %c0_10 = arith.constant 0 : index
    %12 = vector.load %arg7[%c0_9, %c0_10] : memref<128x128xf32, #tpu.memory_space<vmem>>, vector<128x128xf32>
    tpu.vector_store %arg7[%c0_9, %c0_10], %11 {strides = array<i32>} : memref<128x128xf32, #tpu.memory_space<vmem>>, vector<128x128xf32>,
    %c0_i32_11 = arith.constant 0 : i32
    %13 = arith.cmpi eq, %arg1, %c0_i32_11 : i32
    %14 = arith.extui %13 : i1 to i32
    %c0_i32_12 = arith.constant 0 : i32
    %15 = arith.cmpi ne, %14, %c0_i32_12 : i32
    scf.if %15 {
      %c0_13 = arith.constant 0 : index
      %c0_14 = arith.constant 0 : index
      %16 = vector.load %arg7[%c0_13, %c0_14] : memref<128x128xf32, #tpu.memory_space<vmem>>, vector<128x128xf32>
      %17 = vector.extract_strided_slice %16 {offsets = [0, 0], sizes = [128, 16], strides = [1, 1]} : vector<128x128xf32> to vector<128x16xf32>
      %18 = vector.extract_strided_slice %16 {offsets = [0, 16], sizes = [128, 16], strides = [1, 1]} : vector<128x128xf32> to vector<128x16xf32>
      %c0_15 = arith.constant 0 : index
      %c0_16 = arith.constant 0 : index
      %19 = vector.load %arg5[%c0_15, %c0_16] : memref<128x16xf32, #tpu.memory_space<vmem>>, vector<128x16xf32>
      %20 = math.exp %18 : vector<128x16xf32>
      %21 = arith.mulf %19, %20 : vector<128x16xf32>
      %22 = arith.addf %21, %17 : vector<128x16xf32>
      %cst_17 = arith.constant 0.000000e+00 : f32
      %23 = vector.broadcast %cst_17 : f32 to vector<128x80xf32>
      %24 = tpu.concatenate %17, %18, %22, %23 in 1 : vector<128x16xf32>, vector<128x16xf32>, vector<128x16xf32>, vector<128x80xf32> -> vector<128x128xf32>
      %c0_18 = arith.constant 0 : index
      %c0_19 = arith.constant 0 : index
      %25 = vector.load %arg6[%c0_18, %c0_19] : memref<128x128xf32, #tpu.memory_space<vmem>>, vector<128x128xf32>
      tpu.vector_store %arg6[%c0_18, %c0_19], %24 {strides = array<i32>} : memref<128x128xf32, #tpu.memory_space<vmem>>, vector<128x128xf32>,
    } else {
    }
    return
  }
  func.func @transform_0(%arg0: i32, %arg1: i32) -> (i32, i32) {
    %c0_i32 = arith.constant 0 : i32
    %c0_i32_0 = arith.constant 0 : i32
    return %arg1, %c0_i32 : i32, i32
  }
  func.func @transform_1(%arg0: i32, %arg1: i32) -> (i32, i32) {
    %c0_i32 = arith.constant 0 : i32
    return %arg0, %arg1 : i32, i32
  }
  func.func @transform_2(%arg0: i32, %arg1: i32) -> (i32, i32) {
    %c0_i32 = arith.constant 0 : i32
    %c0_i32_0 = arith.constant 0 : i32
    %c0_i32_1 = arith.constant 0 : i32
    return %c0_i32, %c0_i32_0 : i32, i32
  }
  func.func @transform_3(%arg0: i32, %arg1: i32) -> (i32, i32) {
    %c0_i32 = arith.constant 0 : i32
    %c0_i32_0 = arith.constant 0 : i32
    return %arg0, %c0_i32 : i32, i32
  }
  func.func @transform_4(%arg0: i32, %arg1: i32) -> (i32, i32) {
    %c0_i32 = arith.constant 0 : i32
    %c0_i32_0 = arith.constant 0 : i32
    return %arg0, %c0_i32 : i32, i32
  }
}

</mosaic_0001>

<llo_original>
// kernel: graph_forward.3
$region0: #{graph_forward.3}
  #allocation0 [shape = 'u32[]', space=smem, size = 0x4, offset = 0x4, fixed_abs, tag = 'smem constant byte address 0x4 - core index']
  #allocation1 [shape = 'u32[72,128]{1,0:T(1,128)}', space=vmem, size = 0x9000, scoped, tag = 'internal scratch']
  #allocation2 [shape = 'f32[128,128]{1,0:T(8,128)}', space=vmem, size = 0x10000, scoped, tag = 'scratch operand']
  %s0 = inlined_call_operand.vmem [shape: bf16[128,128], index: 0, kind: input, shape index: {}]
  %s1 = inlined_call_operand.vmem [shape: bf16[128,128], index: 1, kind: input, shape index: {}]
  %s2 = inlined_call_operand.vmem [shape: bf16[128,128], index: 2, kind: input, shape index: {}]
  %s3 = inlined_call_operand.vmem [shape: f32[128,128], index: 3, kind: output, shape index: {}]
  %s4 = sld [smem:[#allocation0]]
  $region30: #{graph_forward.3} parent=0
    _
  %s6 = ssub.s32 1, %s4
  %s7 = scalar_select 0, %s6, %s4
  // Predicated region
  $region2: #{graph_forward.3} parent=0 // pred_check
    _
  $region3: #{graph_forward.3} parent=0 // pred_check_branch
    %9 = sbr.rel (0) target = $region5
  $region4: #{graph_forward.3} parent=0 // pred_region
    _
  $region5: #{graph_forward.3} parent=0 // pred_fallthru
    _
  // Predicated region
  $region6: #{graph_forward.3} parent=0 // pred_check
    _
  $region7: #{graph_forward.3} parent=0 // pred_check_branch
    %11 = sbr.rel (0) target = $region9
  $region8: #{graph_forward.3} parent=0 // pred_region
    _
  $region9: #{graph_forward.3} parent=0 // pred_fallthru
    _
  // Predicated region
  $region10: #{graph_forward.3} parent=0 // pred_check
    _
  $region11: #{graph_forward.3} parent=0 // pred_check_branch
    %13 = sbr.rel (0) target = $region13
  $region12: #{graph_forward.3} parent=0 // pred_region
    _
  $region13: #{graph_forward.3} parent=0 // pred_fallthru
    _
  %p14 = scmp.eq.s32.totalorder 0, 0
  // Predicated region
  $region14: #{graph_forward.3} parent=0 // pred_check
    %p15 = pneg %p14
  $region15: #{graph_forward.3} parent=0 // pred_check_branch
    %17 = sbr.rel (%p15) target = $region17
  $region16: #{graph_forward.3} parent=0 // pred_region
    %18 = vst [vmem:[#allocation2] sm:$0xff] 0.0
    %19 = vst [vmem:[#allocation2 + $0x8] sm:$0xff] 0.0
    %20 = vst [vmem:[#allocation2 + $0x10] sm:$0xff] 0.0
    %21 = vst [vmem:[#allocation2 + $0x18] sm:$0xff] 0.0
    %22 = vst [vmem:[#allocation2 + $0x20] sm:$0xff] 0.0
    %23 = vst [vmem:[#allocation2 + $0x28] sm:$0xff] 0.0
    %24 = vst [vmem:[#allocation2 + $0x30] sm:$0xff] 0.0
    %25 = vst [vmem:[#allocation2 + $0x38] sm:$0xff] 0.0
    %26 = vst [vmem:[#allocation2 + $0x40] sm:$0xff] 0.0
    %27 = vst [vmem:[#allocation2 + $0x48] sm:$0xff] 0.0
    %28 = vst [vmem:[#allocation2 + $0x50] sm:$0xff] 0.0
    %29 = vst [vmem:[#allocation2 + $0x58] sm:$0xff] 0.0
    %30 = vst [vmem:[#allocation2 + $0x60] sm:$0xff] 0.0
    %31 = vst [vmem:[#allocation2 + $0x68] sm:$0xff] 0.0
    %32 = vst [vmem:[#allocation2 + $0x70] sm:$0xff] 0.0
    %33 = vst [vmem:[#allocation2 + $0x78] sm:$0xff] 0.0
  $region17: #{graph_forward.3} parent=0 // pred_fallthru
    _
  %v34 = vld [vmem:[%s0] sm:$0xf]
  %v35 = vld [vmem:[%s0 + $0x4] sm:$0xf]
  %v36 = vld [vmem:[%s0 + $0x8] sm:$0xf]
  %v37 = vld [vmem:[%s0 + $0xc] sm:$0xf]
  %v38 = vld [vmem:[%s0 + $0x10] sm:$0xf]
  %v39 = vld [vmem:[%s0 + $0x14] sm:$0xf]
  %v40 = vld [vmem:[%s0 + $0x18] sm:$0xf]
  %v41 = vld [vmem:[%s0 + $0x1c] sm:$0xf]
  %v42 = vld [vmem:[%s0 + $0x20] sm:$0xf]
  %v43 = vld [vmem:[%s0 + $0x24] sm:$0xf]
  %v44 = vld [vmem:[%s0 + $0x28] sm:$0xf]
  %v45 = vld [vmem:[%s0 + $0x2c] sm:$0xf]
  %v46 = vld [vmem:[%s0 + $0x30] sm:$0xf]
  %v47 = vld [vmem:[%s0 + $0x34] sm:$0xf]
  %v48 = vld [vmem:[%s0 + $0x38] sm:$0xf]
  %v49 = vld [vmem:[%s0 + $0x3c] sm:$0xf]
  %v50 = vld [vmem:[%s2] sm:$0xf]
  %v51 = vld [vmem:[%s2 + $0x4] sm:$0xf]
  %v52 = vld [vmem:[%s2 + $0x8] sm:$0xf]
  %v53 = vld [vmem:[%s2 + $0xc] sm:$0xf]
  %v54 = vld [vmem:[%s2 + $0x10] sm:$0xf]
  %v55 = vld [vmem:[%s2 + $0x14] sm:$0xf]
  %v56 = vld [vmem:[%s2 + $0x18] sm:$0xf]
  %v57 = vld [vmem:[%s2 + $0x1c] sm:$0xf]
  %v58 = vld [vmem:[%s2 + $0x20] sm:$0xf]
  %v59 = vld [vmem:[%s2 + $0x24] sm:$0xf]
  %v60 = vld [vmem:[%s2 + $0x28] sm:$0xf]
  %v61 = vld [vmem:[%s2 + $0x2c] sm:$0xf]
  %v62 = vld [vmem:[%s2 + $0x30] sm:$0xf]
  %v63 = vld [vmem:[%s2 + $0x34] sm:$0xf]
  %v64 = vld [vmem:[%s2 + $0x38] sm:$0xf]
  %v65 = vld [vmem:[%s2 + $0x3c] sm:$0xf]
  %v82 = vunpack.c.l.b16 %v34
  %v83 = vunpack.c.l.b16 %v35
  %v84 = vunpack.c.l.b16 %v36
  %v85 = vunpack.c.l.b16 %v37
  %v86 = vunpack.c.l.b16 %v38
  %v87 = vunpack.c.l.b16 %v39
  %v88 = vunpack.c.l.b16 %v40
  %v89 = vunpack.c.l.b16 %v41
  %v90 = vunpack.c.l.b16 %v42
  %v91 = vunpack.c.l.b16 %v43
  %v92 = vunpack.c.l.b16 %v44
  %v93 = vunpack.c.l.b16 %v45
  %v94 = vunpack.c.l.b16 %v46
  %v95 = vunpack.c.l.b16 %v47
  %v96 = vunpack.c.l.b16 %v48
  %v97 = vunpack.c.l.b16 %v49
  %v98 = vpack.c.b16 %v83, %v82
  %v99 = vpack.c.b16 %v85, %v84
  %v100 = vpack.c.b16 %v87, %v86
  %v101 = vpack.c.b16 %v89, %v88
  %v102 = vpack.c.b16 %v91, %v90
  %v103 = vpack.c.b16 %v93, %v92
  %v104 = vpack.c.b16 %v95, %v94
  %v105 = vpack.c.b16 %v97, %v96
  %v130 = vunpack.c.l.b16 %v50
  %v131 = vunpack.c.l.b16 %v51
  %v132 = vunpack.c.l.b16 %v52
  %v133 = vunpack.c.l.b16 %v53
  %v134 = vunpack.c.l.b16 %v54
  %v135 = vunpack.c.l.b16 %v55
  %v136 = vunpack.c.l.b16 %v56
  %v137 = vunpack.c.l.b16 %v57
  %v138 = vunpack.c.l.b16 %v58
  %v139 = vunpack.c.l.b16 %v59
  %v140 = vunpack.c.l.b16 %v60
  %v141 = vunpack.c.l.b16 %v61
  %v142 = vunpack.c.l.b16 %v62
  %v143 = vunpack.c.l.b16 %v63
  %v144 = vunpack.c.l.b16 %v64
  %v145 = vunpack.c.l.b16 %v65
  %v146 = vpack.c.b16 %v131, %v130
  %v147 = vpack.c.b16 %v133, %v132
  %v148 = vpack.c.b16 %v135, %v134
  %v149 = vpack.c.b16 %v137, %v136
  %v150 = vpack.c.b16 %v139, %v138
  %v151 = vpack.c.b16 %v141, %v140
  %v152 = vpack.c.b16 %v143, %v142
  %v153 = vpack.c.b16 %v145, %v144
  %162 = vmatpush.bf16.msra.mxu0 %v153
  %163 = vmatpush.bf16.msra.mxu0 %v152
  %164 = vmatpush.bf16.msra.mxu0 %v151
  %165 = vmatpush.bf16.msra.mxu0 %v150
  %166 = vmatpush.bf16.msra.mxu0 %v149
  %167 = vmatpush.bf16.msra.mxu0 %v148
  %168 = vmatpush.bf16.msra.mxu0 %v147
  %169 = vmatpush.bf16.msra.mxu0 %v146
  %170 = vmatmul.bf16.gmra.mxu0 %v98
  %v171 = vpop.f32.mrf.mxu0
  %v172 = vadd.f32 0.0, %v171
  %v173 = vpop.f32.mrf.mxu0
  %v174 = vadd.f32 0.0, %v173
  %175 = vmatmul.bf16.gmra.mxu0 %v99
  %v176 = vpop.f32.mrf.mxu0
  %v177 = vadd.f32 0.0, %v176
  %v178 = vpop.f32.mrf.mxu0
  %v179 = vadd.f32 0.0, %v178
  %180 = vmatmul.bf16.gmra.mxu0 %v100
  %v181 = vpop.f32.mrf.mxu0
  %v182 = vadd.f32 0.0, %v181
  %v183 = vpop.f32.mrf.mxu0
  %v184 = vadd.f32 0.0, %v183
  %185 = vmatmul.bf16.gmra.mxu0 %v101
  %v186 = vpop.f32.mrf.mxu0
  %v187 = vadd.f32 0.0, %v186
  %v188 = vpop.f32.mrf.mxu0
  %v189 = vadd.f32 0.0, %v188
  %190 = vmatmul.bf16.gmra.mxu0 %v102
  %v191 = vpop.f32.mrf.mxu0
  %v192 = vadd.f32 0.0, %v191
  %v193 = vpop.f32.mrf.mxu0
  %v194 = vadd.f32 0.0, %v193
  %195 = vmatmul.bf16.gmra.mxu0 %v103
  %v196 = vpop.f32.mrf.mxu0
  %v197 = vadd.f32 0.0, %v196
  %v198 = vpop.f32.mrf.mxu0
  %v199 = vadd.f32 0.0, %v198
  %200 = vmatmul.bf16.gmra.mxu0 %v104
  %v201 = vpop.f32.mrf.mxu0
  %v202 = vadd.f32 0.0, %v201
  %v203 = vpop.f32.mrf.mxu0
  %v204 = vadd.f32 0.0, %v203
  %205 = vmatmul.bf16.gmra.mxu0 %v105
  %v206 = vpop.f32.mrf.mxu0
  %v207 = vadd.f32 0.0, %v206
  %v208 = vpop.f32.mrf.mxu0
  %v209 = vadd.f32 0.0, %v208
  %210 = vdwg.mxu0
  %v211 = vld [vmem:[#allocation2] sm:$0xff]
  %v212 = vld [vmem:[#allocation2 + $0x8] sm:$0xff]
  %v213 = vld [vmem:[#allocation2 + $0x10] sm:$0xff]
  %v214 = vld [vmem:[#allocation2 + $0x18] sm:$0xff]
  %v215 = vld [vmem:[#allocation2 + $0x20] sm:$0xff]
  %v216 = vld [vmem:[#allocation2 + $0x28] sm:$0xff]
  %v217 = vld [vmem:[#allocation2 + $0x30] sm:$0xff]
  %v218 = vld [vmem:[#allocation2 + $0x38] sm:$0xff]
  %v219 = vld [vmem:[#allocation2 + $0x40] sm:$0xff]
  %v220 = vld [vmem:[#allocation2 + $0x48] sm:$0xff]
  %v221 = vld [vmem:[#allocation2 + $0x50] sm:$0xff]
  %v222 = vld [vmem:[#allocation2 + $0x58] sm:$0xff]
  %v223 = vld [vmem:[#allocation2 + $0x60] sm:$0xff]
  %v224 = vld [vmem:[#allocation2 + $0x68] sm:$0xff]
  %v225 = vld [vmem:[#allocation2 + $0x70] sm:$0xff]
  %v226 = vld [vmem:[#allocation2 + $0x78] sm:$0xff]
  %v227 = vld [vmem:[%s1] sm:$0xf]
  %v228 = vld [vmem:[%s1 + $0x4] sm:$0xf]
  %v229 = vld [vmem:[%s1 + $0x8] sm:$0xf]
  %v230 = vld [vmem:[%s1 + $0xc] sm:$0xf]
  %v231 = vld [vmem:[%s1 + $0x10] sm:$0xf]
  %v232 = vld [vmem:[%s1 + $0x14] sm:$0xf]
  %v233 = vld [vmem:[%s1 + $0x18] sm:$0xf]
  %v234 = vld [vmem:[%s1 + $0x1c] sm:$0xf]
  %v235 = vld [vmem:[%s1 + $0x20] sm:$0xf]
  %v236 = vld [vmem:[%s1 + $0x24] sm:$0xf]
  %v237 = vld [vmem:[%s1 + $0x28] sm:$0xf]
  %v238 = vld [vmem:[%s1 + $0x2c] sm:$0xf]
  %v239 = vld [vmem:[%s1 + $0x30] sm:$0xf]
  %v240 = vld [vmem:[%s1 + $0x34] sm:$0xf]
  %v241 = vld [vmem:[%s1 + $0x38] sm:$0xf]
  %v242 = vld [vmem:[%s1 + $0x3c] sm:$0xf]
  %v243 = vpack.c.bf16 %v174, %v172
  %v244 = vpack.c.bf16 %v179, %v177
  %v245 = vpack.c.bf16 %v184, %v182
  %v246 = vpack.c.bf16 %v189, %v187
  %v247 = vpack.c.bf16 %v194, %v192
  %v248 = vpack.c.bf16 %v199, %v197
  %v249 = vpack.c.bf16 %v204, %v202
  %v250 = vpack.c.bf16 %v209, %v207
  %v267 = vunpack.c.l.b16 %v227
  %v268 = vunpack.c.l.b16 %v228
  %v269 = vunpack.c.l.b16 %v229
  %v270 = vunpack.c.l.b16 %v230
  %v271 = vunpack.c.l.b16 %v231
  %v272 = vunpack.c.l.b16 %v232
  %v273 = vunpack.c.l.b16 %v233
  %v274 = vunpack.c.l.b16 %v234
  %v275 = vunpack.c.l.b16 %v235
  %v276 = vunpack.c.l.b16 %v236
  %v277 = vunpack.c.l.b16 %v237
  %v278 = vunpack.c.l.b16 %v238
  %v279 = vunpack.c.l.b16 %v239
  %v280 = vunpack.c.l.b16 %v240
  %v281 = vunpack.c.l.b16 %v241
  %v282 = vunpack.c.l.b16 %v242
  %v283 = vpack.c.b16 %v268, %v267
  %v284 = vpack.c.b16 %v270, %v269
  %v285 = vpack.c.b16 %v272, %v271
  %v286 = vpack.c.b16 %v274, %v273
  %v287 = vpack.c.b16 %v276, %v275
  %v288 = vpack.c.b16 %v278, %v277
  %v289 = vpack.c.b16 %v280, %v279
  %v290 = vpack.c.b16 %v282, %v281
  %299 = vmatpush.bf16.msra.mxu0 %v250
  %300 = vmatpush.bf16.msra.mxu0 %v249
  %301 = vmatpush.bf16.msra.mxu0 %v248
  %302 = vmatpush.bf16.msra.mxu0 %v247
  %303 = vmatpush.bf16.msra.mxu0 %v246
  %304 = vmatpush.bf16.msra.mxu0 %v245
  %305 = vmatpush.bf16.msra.mxu0 %v244
  %306 = vmatpush.bf16.msra.mxu0 %v243
  %307 = vmatmul.bf16.gmra.mxu0 %v283
  %v308 = vpop.f32.mrf.mxu0
  %v309 = vadd.f32 0.0, %v308
  %v310 = vpop.f32.mrf.mxu0
  %v311 = vadd.f32 0.0, %v310
  %312 = vmatmul.bf16.gmra.mxu0 %v284
  %v313 = vpop.f32.mrf.mxu0
  %v314 = vadd.f32 0.0, %v313
  %v315 = vpop.f32.mrf.mxu0
  %v316 = vadd.f32 0.0, %v315
  %317 = vmatmul.bf16.gmra.mxu0 %v285
  %v318 = vpop.f32.mrf.mxu0
  %v319 = vadd.f32 0.0, %v318
  %v320 = vpop.f32.mrf.mxu0
  %v321 = vadd.f32 0.0, %v320
  %322 = vmatmul.bf16.gmra.mxu0 %v286
  %v323 = vpop.f32.mrf.mxu0
  %v324 = vadd.f32 0.0, %v323
  %v325 = vpop.f32.mrf.mxu0
  %v326 = vadd.f32 0.0, %v325
  %327 = vmatmul.bf16.gmra.mxu0 %v287
  %v328 = vpop.f32.mrf.mxu0
  %v329 = vadd.f32 0.0, %v328
  %v330 = vpop.f32.mrf.mxu0
  %v331 = vadd.f32 0.0, %v330
  %332 = vmatmul.bf16.gmra.mxu0 %v288
  %v333 = vpop.f32.mrf.mxu0
  %v334 = vadd.f32 0.0, %v333
  %v335 = vpop.f32.mrf.mxu0
  %v336 = vadd.f32 0.0, %v335
  %337 = vmatmul.bf16.gmra.mxu0 %v289
  %v338 = vpop.f32.mrf.mxu0
  %v339 = vadd.f32 0.0, %v338
  %v340 = vpop.f32.mrf.mxu0
  %v341 = vadd.f32 0.0, %v340
  %342 = vmatmul.bf16.gmra.mxu0 %v290
  %v343 = vpop.f32.mrf.mxu0
  %v344 = vadd.f32 0.0, %v343
  %v345 = vpop.f32.mrf.mxu0
  %v346 = vadd.f32 0.0, %v345
  %347 = vdwg.mxu0
  %v348 = vadd.f32 %v211, %v309
  %v349 = vadd.f32 %v212, %v311
  %v350 = vadd.f32 %v213, %v314
  %v351 = vadd.f32 %v214, %v316
  %v352 = vadd.f32 %v215, %v319
  %v353 = vadd.f32 %v216, %v321
  %v354 = vadd.f32 %v217, %v324
  %v355 = vadd.f32 %v218, %v326
  %v356 = vadd.f32 %v219, %v329
  %v357 = vadd.f32 %v220, %v331
  %v358 = vadd.f32 %v221, %v334
  %v359 = vadd.f32 %v222, %v336
  %v360 = vadd.f32 %v223, %v339
  %v361 = vadd.f32 %v224, %v341
  %v362 = vadd.f32 %v225, %v344
  %v363 = vadd.f32 %v226, %v346
  %364 = vst [vmem:[#allocation2] sm:$0xff] %v348
  %365 = vst [vmem:[#allocation2 + $0x8] sm:$0xff] %v349
  %366 = vst [vmem:[#allocation2 + $0x10] sm:$0xff] %v350
  %367 = vst [vmem:[#allocation2 + $0x18] sm:$0xff] %v351
  %368 = vst [vmem:[#allocation2 + $0x20] sm:$0xff] %v352
  %369 = vst [vmem:[#allocation2 + $0x28] sm:$0xff] %v353
  %370 = vst [vmem:[#allocation2 + $0x30] sm:$0xff] %v354
  %371 = vst [vmem:[#allocation2 + $0x38] sm:$0xff] %v355
  %372 = vst [vmem:[#allocation2 + $0x40] sm:$0xff] %v356
  %373 = vst [vmem:[#allocation2 + $0x48] sm:$0xff] %v357
  %374 = vst [vmem:[#allocation2 + $0x50] sm:$0xff] %v358
  %375 = vst [vmem:[#allocation2 + $0x58] sm:$0xff] %v359
  %376 = vst [vmem:[#allocation2 + $0x60] sm:$0xff] %v360
  %377 = vst [vmem:[#allocation2 + $0x68] sm:$0xff] %v361
  %378 = vst [vmem:[#allocation2 + $0x70] sm:$0xff] %v362
  %379 = vst [vmem:[#allocation2 + $0x78] sm:$0xff] %v363
  // Predicated region
  $region18: #{graph_forward.3} parent=0 // pred_check
    %p380 = pneg %p14
  $region19: #{graph_forward.3} parent=0 // pred_check_branch
    %382 = sbr.rel (%p380) target = $region21
  $region20: #{graph_forward.3} parent=0 // pred_region
    %v383 = vld [vmem:[#allocation2] sm:$0xff]
    %v384 = vld [vmem:[#allocation2 + $0x8] sm:$0xff]
    %v385 = vld [vmem:[#allocation2 + $0x10] sm:$0xff]
    %v386 = vld [vmem:[#allocation2 + $0x18] sm:$0xff]
    %v387 = vld [vmem:[#allocation2 + $0x20] sm:$0xff]
    %v388 = vld [vmem:[#allocation2 + $0x28] sm:$0xff]
    %v389 = vld [vmem:[#allocation2 + $0x30] sm:$0xff]
    %v390 = vld [vmem:[#allocation2 + $0x38] sm:$0xff]
    %v391 = vld [vmem:[#allocation2 + $0x40] sm:$0xff]
    %v392 = vld [vmem:[#allocation2 + $0x48] sm:$0xff]
    %v393 = vld [vmem:[#allocation2 + $0x50] sm:$0xff]
    %v394 = vld [vmem:[#allocation2 + $0x58] sm:$0xff]
    %v395 = vld [vmem:[#allocation2 + $0x60] sm:$0xff]
    %v396 = vld [vmem:[#allocation2 + $0x68] sm:$0xff]
    %v397 = vld [vmem:[#allocation2 + $0x70] sm:$0xff]
    %v398 = vld [vmem:[#allocation2 + $0x78] sm:$0xff]
    %v399 = vtanh.pop %v383
    %v400 = vtanh.pop %v384
    %v401 = vtanh.pop %v385
    %v402 = vtanh.pop %v386
    %v403 = vtanh.pop %v387
    %v404 = vtanh.pop %v388
    %v405 = vtanh.pop %v389
    %v406 = vtanh.pop %v390
    %v407 = vtanh.pop %v391
    %v408 = vtanh.pop %v392
    %v409 = vtanh.pop %v393
    %v410 = vtanh.pop %v394
    %v411 = vtanh.pop %v395
    %v412 = vtanh.pop %v396
    %v413 = vtanh.pop %v397
    %v414 = vtanh.pop %v398
    %415 = vst [vmem:[%s3] sm:$0xff] %v399
    %416 = vst [vmem:[%s3 + $0x8] sm:$0xff] %v400
    %417 = vst [vmem:[%s3 + $0x10] sm:$0xff] %v401
    %418 = vst [vmem:[%s3 + $0x18] sm:$0xff] %v402
    %419 = vst [vmem:[%s3 + $0x20] sm:$0xff] %v403
    %420 = vst [vmem:[%s3 + $0x28] sm:$0xff] %v404
    %421 = vst [vmem:[%s3 + $0x30] sm:$0xff] %v405
    %422 = vst [vmem:[%s3 + $0x38] sm:$0xff] %v406
    %423 = vst [vmem:[%s3 + $0x40] sm:$0xff] %v407
    %424 = vst [vmem:[%s3 + $0x48] sm:$0xff] %v408
    %425 = vst [vmem:[%s3 + $0x50] sm:$0xff] %v409
    %426 = vst [vmem:[%s3 + $0x58] sm:$0xff] %v410
    %427 = vst [vmem:[%s3 + $0x60] sm:$0xff] %v411
    %428 = vst [vmem:[%s3 + $0x68] sm:$0xff] %v412
    %429 = vst [vmem:[%s3 + $0x70] sm:$0xff] %v413
    %430 = vst [vmem:[%s3 + $0x78] sm:$0xff] %v414
  $region21: #{graph_forward.3} parent=0 // pred_fallthru
    _
  // Predicated region
  $region22: #{graph_forward.3} parent=0 // pred_check
    _
  $region23: #{graph_forward.3} parent=0 // pred_check_branch
    %432 = sbr.rel (0) target = $region25
  $region24: #{graph_forward.3} parent=0 // pred_region
    _
  $region25: #{graph_forward.3} parent=0 // pred_fallthru
    _
  // Predicated region
  $region26: #{graph_forward.3} parent=0 // pred_check
    _
  $region27: #{graph_forward.3} parent=0 // pred_check_branch
    %434 = sbr.rel (0) target = $region29
  $region28: #{graph_forward.3} parent=0 // pred_region
    _
  $region29: #{graph_forward.3} parent=0 // pred_fallthru
    _

// kernel: graph_forward.4
$region0: #{graph_forward.4}
  #allocation0 [shape = 'u32[]', space=smem, size = 0x4, offset = 0x4, fixed_abs, tag = 'smem constant byte address 0x4 - core index']
  #allocation1 [shape = 'u32[72,128]{1,0:T(1,128)}', space=vmem, size = 0x9000, scoped, tag = 'internal scratch']
  #allocation2 [shape = 'f32[128,128]{1,0:T(8,128)}', space=vmem, size = 0x10000, scoped, tag = 'scratch operand']
  %s0 = inlined_call_operand.vmem [shape: f32[128,128], index: 0, kind: input, shape index: {}]
  %s1 = inlined_call_operand.vmem [shape: bf16[128,128], index: 1, kind: input, shape index: {}]
  %s2 = inlined_call_operand.vmem [shape: bf16[128,128], index: 2, kind: input, shape index: {}]
  %s3 = inlined_call_operand.vmem [shape: f32[128,128], index: 3, kind: output, shape index: {}]
  %s4 = sld [smem:[#allocation0]]
  $region30: #{graph_forward.4} parent=0
    _
  %s6 = ssub.s32 1, %s4
  %s7 = scalar_select 0, %s6, %s4
  // Predicated region
  $region2: #{graph_forward.4} parent=0 // pred_check
    _
  $region3: #{graph_forward.4} parent=0 // pred_check_branch
    %9 = sbr.rel (0) target = $region5
  $region4: #{graph_forward.4} parent=0 // pred_region
    _
  $region5: #{graph_forward.4} parent=0 // pred_fallthru
    _
  // Predicated region
  $region6: #{graph_forward.4} parent=0 // pred_check
    _
  $region7: #{graph_forward.4} parent=0 // pred_check_branch
    %11 = sbr.rel (0) target = $region9
  $region8: #{graph_forward.4} parent=0 // pred_region
    _
  $region9: #{graph_forward.4} parent=0 // pred_fallthru
    _
  // Predicated region
  $region10: #{graph_forward.4} parent=0 // pred_check
    _
  $region11: #{graph_forward.4} parent=0 // pred_check_branch
    %13 = sbr.rel (0) target = $region13
  $region12: #{graph_forward.4} parent=0 // pred_region
    _
  $region13: #{graph_forward.4} parent=0 // pred_fallthru
    _
  %p14 = scmp.eq.s32.totalorder 0, 0
  // Predicated region
  $region14: #{graph_forward.4} parent=0 // pred_check
    %p15 = pneg %p14
  $region15: #{graph_forward.4} parent=0 // pred_check_branch
    %17 = sbr.rel (%p15) target = $region17
  $region16: #{graph_forward.4} parent=0 // pred_region
    %18 = vst [vmem:[#allocation2] sm:$0xff] 0.0
    %19 = vst [vmem:[#allocation2 + $0x8] sm:$0xff] 0.0
    %20 = vst [vmem:[#allocation2 + $0x10] sm:$0xff] 0.0
    %21 = vst [vmem:[#allocation2 + $0x18] sm:$0xff] 0.0
    %22 = vst [vmem:[#allocation2 + $0x20] sm:$0xff] 0.0
    %23 = vst [vmem:[#allocation2 + $0x28] sm:$0xff] 0.0
    %24 = vst [vmem:[#allocation2 + $0x30] sm:$0xff] 0.0
    %25 = vst [vmem:[#allocation2 + $0x38] sm:$0xff] 0.0
    %26 = vst [vmem:[#allocation2 + $0x40] sm:$0xff] 0.0
    %27 = vst [vmem:[#allocation2 + $0x48] sm:$0xff] 0.0
    %28 = vst [vmem:[#allocation2 + $0x50] sm:$0xff] 0.0
    %29 = vst [vmem:[#allocation2 + $0x58] sm:$0xff] 0.0
    %30 = vst [vmem:[#allocation2 + $0x60] sm:$0xff] 0.0
    %31 = vst [vmem:[#allocation2 + $0x68] sm:$0xff] 0.0
    %32 = vst [vmem:[#allocation2 + $0x70] sm:$0xff] 0.0
    %33 = vst [vmem:[#allocation2 + $0x78] sm:$0xff] 0.0
  $region17: #{graph_forward.4} parent=0 // pred_fallthru
    _
  %v34 = vld [vmem:[%s0] sm:$0xff]
  %v35 = vld [vmem:[%s0 + $0x8] sm:$0xff]
  %v36 = vld [vmem:[%s0 + $0x10] sm:$0xff]
  %v37 = vld [vmem:[%s0 + $0x18] sm:$0xff]
  %v38 = vld [vmem:[%s0 + $0x20] sm:$0xff]
  %v39 = vld [vmem:[%s0 + $0x28] sm:$0xff]
  %v40 = vld [vmem:[%s0 + $0x30] sm:$0xff]
  %v41 = vld [vmem:[%s0 + $0x38] sm:$0xff]
  %v42 = vld [vmem:[%s0 + $0x40] sm:$0xff]
  %v43 = vld [vmem:[%s0 + $0x48] sm:$0xff]
  %v44 = vld [vmem:[%s0 + $0x50] sm:$0xff]
  %v45 = vld [vmem:[%s0 + $0x58] sm:$0xff]
  %v46 = vld [vmem:[%s0 + $0x60] sm:$0xff]
  %v47 = vld [vmem:[%s0 + $0x68] sm:$0xff]
  %v48 = vld [vmem:[%s0 + $0x70] sm:$0xff]
  %v49 = vld [vmem:[%s0 + $0x78] sm:$0xff]
  %v50 = vpack.c.bf16 %v35, %v34
  %v51 = vpack.c.bf16 %v37, %v36
  %v52 = vpack.c.bf16 %v39, %v38
  %v53 = vpack.c.bf16 %v41, %v40
  %v54 = vpack.c.bf16 %v43, %v42
  %v55 = vpack.c.bf16 %v45, %v44
  %v56 = vpack.c.bf16 %v47, %v46
  %v57 = vpack.c.bf16 %v49, %v48
  %v58 = vld [vmem:[%s2] sm:$0xf]
  %v59 = vld [vmem:[%s2 + $0x4] sm:$0xf]
  %v60 = vld [vmem:[%s2 + $0x8] sm:$0xf]
  %v61 = vld [vmem:[%s2 + $0xc] sm:$0xf]
  %v62 = vld [vmem:[%s2 + $0x10] sm:$0xf]
  %v63 = vld [vmem:[%s2 + $0x14] sm:$0xf]
  %v64 = vld [vmem:[%s2 + $0x18] sm:$0xf]
  %v65 = vld [vmem:[%s2 + $0x1c] sm:$0xf]
  %v66 = vld [vmem:[%s2 + $0x20] sm:$0xf]
  %v67 = vld [vmem:[%s2 + $0x24] sm:$0xf]
  %v68 = vld [vmem:[%s2 + $0x28] sm:$0xf]
  %v69 = vld [vmem:[%s2 + $0x2c] sm:$0xf]
  %v70 = vld [vmem:[%s2 + $0x30] sm:$0xf]
  %v71 = vld [vmem:[%s2 + $0x34] sm:$0xf]
  %v72 = vld [vmem:[%s2 + $0x38] sm:$0xf]
  %v73 = vld [vmem:[%s2 + $0x3c] sm:$0xf]
  %v90 = vunpack.c.l.b16 %v58
  %v91 = vunpack.c.l.b16 %v59
  %v92 = vunpack.c.l.b16 %v60
  %v93 = vunpack.c.l.b16 %v61
  %v94 = vunpack.c.l.b16 %v62
  %v95 = vunpack.c.l.b16 %v63
  %v96 = vunpack.c.l.b16 %v64
  %v97 = vunpack.c.l.b16 %v65
  %v98 = vunpack.c.l.b16 %v66
  %v99 = vunpack.c.l.b16 %v67
  %v100 = vunpack.c.l.b16 %v68
  %v101 = vunpack.c.l.b16 %v69
  %v102 = vunpack.c.l.b16 %v70
  %v103 = vunpack.c.l.b16 %v71
  %v104 = vunpack.c.l.b16 %v72
  %v105 = vunpack.c.l.b16 %v73
  %v106 = vpack.c.b16 %v91, %v90
  %v107 = vpack.c.b16 %v93, %v92
  %v108 = vpack.c.b16 %v95, %v94
  %v109 = vpack.c.b16 %v97, %v96
  %v110 = vpack.c.b16 %v99, %v98
  %v111 = vpack.c.b16 %v101, %v100
  %v112 = vpack.c.b16 %v103, %v102
  %v113 = vpack.c.b16 %v105, %v104
  %122 = vmatpush.bf16.msra.mxu0 %v113
  %123 = vmatpush.bf16.msra.mxu0 %v112
  %124 = vmatpush.bf16.msra.mxu0 %v111
  %125 = vmatpush.bf16.msra.mxu0 %v110
  %126 = vmatpush.bf16.msra.mxu0 %v109
  %127 = vmatpush.bf16.msra.mxu0 %v108
  %128 = vmatpush.bf16.msra.mxu0 %v107
  %129 = vmatpush.bf16.msra.mxu0 %v106
  %130 = vmatmul.bf16.gmra.mxu0 %v50
  %v131 = vpop.f32.mrf.mxu0
  %v132 = vadd.f32 0.0, %v131
  %v133 = vpop.f32.mrf.mxu0
  %v134 = vadd.f32 0.0, %v133
  %135 = vmatmul.bf16.gmra.mxu0 %v51
  %v136 = vpop.f32.mrf.mxu0
  %v137 = vadd.f32 0.0, %v136
  %v138 = vpop.f32.mrf.mxu0
  %v139 = vadd.f32 0.0, %v138
  %140 = vmatmul.bf16.gmra.mxu0 %v52
  %v141 = vpop.f32.mrf.mxu0
  %v142 = vadd.f32 0.0, %v141
  %v143 = vpop.f32.mrf.mxu0
  %v144 = vadd.f32 0.0, %v143
  %145 = vmatmul.bf16.gmra.mxu0 %v53
  %v146 = vpop.f32.mrf.mxu0
  %v147 = vadd.f32 0.0, %v146
  %v148 = vpop.f32.mrf.mxu0
  %v149 = vadd.f32 0.0, %v148
  %150 = vmatmul.bf16.gmra.mxu0 %v54
  %v151 = vpop.f32.mrf.mxu0
  %v152 = vadd.f32 0.0, %v151
  %v153 = vpop.f32.mrf.mxu0
  %v154 = vadd.f32 0.0, %v153
  %155 = vmatmul.bf16.gmra.mxu0 %v55
  %v156 = vpop.f32.mrf.mxu0
  %v157 = vadd.f32 0.0, %v156
  %v158 = vpop.f32.mrf.mxu0
  %v159 = vadd.f32 0.0, %v158
  %160 = vmatmul.bf16.gmra.mxu0 %v56
  %v161 = vpop.f32.mrf.mxu0
  %v162 = vadd.f32 0.0, %v161
  %v163 = vpop.f32.mrf.mxu0
  %v164 = vadd.f32 0.0, %v163
  %165 = vmatmul.bf16.gmra.mxu0 %v57
  %v166 = vpop.f32.mrf.mxu0
  %v167 = vadd.f32 0.0, %v166
  %v168 = vpop.f32.mrf.mxu0
  %v169 = vadd.f32 0.0, %v168
  %170 = vdwg.mxu0
  %v171 = vld [vmem:[#allocation2] sm:$0xff]
  %v172 = vld [vmem:[#allocation2 + $0x8] sm:$0xff]
  %v173 = vld [vmem:[#allocation2 + $0x10] sm:$0xff]
  %v174 = vld [vmem:[#allocation2 + $0x18] sm:$0xff]
  %v175 = vld [vmem:[#allocation2 + $0x20] sm:$0xff]
  %v176 = vld [vmem:[#allocation2 + $0x28] sm:$0xff]
  %v177 = vld [vmem:[#allocation2 + $0x30] sm:$0xff]
  %v178 = vld [vmem:[#allocation2 + $0x38] sm:$0xff]
  %v179 = vld [vmem:[#allocation2 + $0x40] sm:$0xff]
  %v180 = vld [vmem:[#allocation2 + $0x48] sm:$0xff]
  %v181 = vld [vmem:[#allocation2 + $0x50] sm:$0xff]
  %v182 = vld [vmem:[#allocation2 + $0x58] sm:$0xff]
  %v183 = vld [vmem:[#allocation2 + $0x60] sm:$0xff]
  %v184 = vld [vmem:[#allocation2 + $0x68] sm:$0xff]
  %v185 = vld [vmem:[#allocation2 + $0x70] sm:$0xff]
  %v186 = vld [vmem:[#allocation2 + $0x78] sm:$0xff]
  %v187 = vld [vmem:[%s1] sm:$0xf]
  %v188 = vld [vmem:[%s1 + $0x4] sm:$0xf]
  %v189 = vld [vmem:[%s1 + $0x8] sm:$0xf]
  %v190 = vld [vmem:[%s1 + $0xc] sm:$0xf]
  %v191 = vld [vmem:[%s1 + $0x10] sm:$0xf]
  %v192 = vld [vmem:[%s1 + $0x14] sm:$0xf]
  %v193 = vld [vmem:[%s1 + $0x18] sm:$0xf]
  %v194 = vld [vmem:[%s1 + $0x1c] sm:$0xf]
  %v195 = vld [vmem:[%s1 + $0x20] sm:$0xf]
  %v196 = vld [vmem:[%s1 + $0x24] sm:$0xf]
  %v197 = vld [vmem:[%s1 + $0x28] sm:$0xf]
  %v198 = vld [vmem:[%s1 + $0x2c] sm:$0xf]
  %v199 = vld [vmem:[%s1 + $0x30] sm:$0xf]
  %v200 = vld [vmem:[%s1 + $0x34] sm:$0xf]
  %v201 = vld [vmem:[%s1 + $0x38] sm:$0xf]
  %v202 = vld [vmem:[%s1 + $0x3c] sm:$0xf]
  %v203 = vpack.c.bf16 %v134, %v132
  %v204 = vpack.c.bf16 %v139, %v137
  %v205 = vpack.c.bf16 %v144, %v142
  %v206 = vpack.c.bf16 %v149, %v147
  %v207 = vpack.c.bf16 %v154, %v152
  %v208 = vpack.c.bf16 %v159, %v157
  %v209 = vpack.c.bf16 %v164, %v162
  %v210 = vpack.c.bf16 %v169, %v167
  %v227 = vunpack.c.l.b16 %v187
  %v228 = vunpack.c.l.b16 %v188
  %v229 = vunpack.c.l.b16 %v189
  %v230 = vunpack.c.l.b16 %v190
  %v231 = vunpack.c.l.b16 %v191
  %v232 = vunpack.c.l.b16 %v192
  %v233 = vunpack.c.l.b16 %v193
  %v234 = vunpack.c.l.b16 %v194
  %v235 = vunpack.c.l.b16 %v195
  %v236 = vunpack.c.l.b16 %v196
  %v237 = vunpack.c.l.b16 %v197
  %v238 = vunpack.c.l.b16 %v198
  %v239 = vunpack.c.l.b16 %v199
  %v240 = vunpack.c.l.b16 %v200
  %v241 = vunpack.c.l.b16 %v201
  %v242 = vunpack.c.l.b16 %v202
  %v243 = vpack.c.b16 %v228, %v227
  %v244 = vpack.c.b16 %v230, %v229
  %v245 = vpack.c.b16 %v232, %v231
  %v246 = vpack.c.b16 %v234, %v233
  %v247 = vpack.c.b16 %v236, %v235
  %v248 = vpack.c.b16 %v238, %v237
  %v249 = vpack.c.b16 %v240, %v239
  %v250 = vpack.c.b16 %v242, %v241
  %259 = vmatpush.bf16.msra.mxu0 %v210
  %260 = vmatpush.bf16.msra.mxu0 %v209
  %261 = vmatpush.bf16.msra.mxu0 %v208
  %262 = vmatpush.bf16.msra.mxu0 %v207
  %263 = vmatpush.bf16.msra.mxu0 %v206
  %264 = vmatpush.bf16.msra.mxu0 %v205
  %265 = vmatpush.bf16.msra.mxu0 %v204
  %266 = vmatpush.bf16.msra.mxu0 %v203
  %267 = vmatmul.bf16.gmra.mxu0 %v243
  %v268 = vpop.f32.mrf.mxu0
  %v269 = vadd.f32 0.0, %v268
  %v270 = vpop.f32.mrf.mxu0
  %v271 = vadd.f32 0.0, %v270
  %272 = vmatmul.bf16.gmra.mxu0 %v244
  %v273 = vpop.f32.mrf.mxu0
  %v274 = vadd.f32 0.0, %v273
  %v275 = vpop.f32.mrf.mxu0
  %v276 = vadd.f32 0.0, %v275
  %277 = vmatmul.bf16.gmra.mxu0 %v245
  %v278 = vpop.f32.mrf.mxu0
  %v279 = vadd.f32 0.0, %v278
  %v280 = vpop.f32.mrf.mxu0
  %v281 = vadd.f32 0.0, %v280
  %282 = vmatmul.bf16.gmra.mxu0 %v246
  %v283 = vpop.f32.mrf.mxu0
  %v284 = vadd.f32 0.0, %v283
  %v285 = vpop.f32.mrf.mxu0
  %v286 = vadd.f32 0.0, %v285
  %287 = vmatmul.bf16.gmra.mxu0 %v247
  %v288 = vpop.f32.mrf.mxu0
  %v289 = vadd.f32 0.0, %v288
  %v290 = vpop.f32.mrf.mxu0
  %v291 = vadd.f32 0.0, %v290
  %292 = vmatmul.bf16.gmra.mxu0 %v248
  %v293 = vpop.f32.mrf.mxu0
  %v294 = vadd.f32 0.0, %v293
  %v295 = vpop.f32.mrf.mxu0
  %v296 = vadd.f32 0.0, %v295
  %297 = vmatmul.bf16.gmra.mxu0 %v249
  %v298 = vpop.f32.mrf.mxu0
  %v299 = vadd.f32 0.0, %v298
  %v300 = vpop.f32.mrf.mxu0
  %v301 = vadd.f32 0.0, %v300
  %302 = vmatmul.bf16.gmra.mxu0 %v250
  %v303 = vpop.f32.mrf.mxu0
  %v304 = vadd.f32 0.0, %v303
  %v305 = vpop.f32.mrf.mxu0
  %v306 = vadd.f32 0.0, %v305
  %307 = vdwg.mxu0
  %v308 = vadd.f32 %v171, %v269
  %v309 = vadd.f32 %v172, %v271
  %v310 = vadd.f32 %v173, %v274
  %v311 = vadd.f32 %v174, %v276
  %v312 = vadd.f32 %v175, %v279
  %v313 = vadd.f32 %v176, %v281
  %v314 = vadd.f32 %v177, %v284
  %v315 = vadd.f32 %v178, %v286
  %v316 = vadd.f32 %v179, %v289
  %v317 = vadd.f32 %v180, %v291
  %v318 = vadd.f32 %v181, %v294
  %v319 = vadd.f32 %v182, %v296
  %v320 = vadd.f32 %v183, %v299
  %v321 = vadd.f32 %v184, %v301
  %v322 = vadd.f32 %v185, %v304
  %v323 = vadd.f32 %v186, %v306
  %324 = vst [vmem:[#allocation2] sm:$0xff] %v308
  %325 = vst [vmem:[#allocation2 + $0x8] sm:$0xff] %v309
  %326 = vst [vmem:[#allocation2 + $0x10] sm:$0xff] %v310
  %327 = vst [vmem:[#allocation2 + $0x18] sm:$0xff] %v311
  %328 = vst [vmem:[#allocation2 + $0x20] sm:$0xff] %v312
  %329 = vst [vmem:[#allocation2 + $0x28] sm:$0xff] %v313
  %330 = vst [vmem:[#allocation2 + $0x30] sm:$0xff] %v314
  %331 = vst [vmem:[#allocation2 + $0x38] sm:$0xff] %v315
  %332 = vst [vmem:[#allocation2 + $0x40] sm:$0xff] %v316
  %333 = vst [vmem:[#allocation2 + $0x48] sm:$0xff] %v317
  %334 = vst [vmem:[#allocation2 + $0x50] sm:$0xff] %v318
  %335 = vst [vmem:[#allocation2 + $0x58] sm:$0xff] %v319
  %336 = vst [vmem:[#allocation2 + $0x60] sm:$0xff] %v320
  %337 = vst [vmem:[#allocation2 + $0x68] sm:$0xff] %v321
  %338 = vst [vmem:[#allocation2 + $0x70] sm:$0xff] %v322
  %339 = vst [vmem:[#allocation2 + $0x78] sm:$0xff] %v323
  // Predicated region
  $region18: #{graph_forward.4} parent=0 // pred_check
    %p340 = pneg %p14
  $region19: #{graph_forward.4} parent=0 // pred_check_branch
    %342 = sbr.rel (%p340) target = $region21
  $region20: #{graph_forward.4} parent=0 // pred_region
    %v343 = vld [vmem:[#allocation2] sm:$0xff]
    %v344 = vld [vmem:[#allocation2 + $0x8] sm:$0xff]
    %v345 = vld [vmem:[#allocation2 + $0x10] sm:$0xff]
    %v346 = vld [vmem:[#allocation2 + $0x18] sm:$0xff]
    %v347 = vld [vmem:[#allocation2 + $0x20] sm:$0xff]
    %v348 = vld [vmem:[#allocation2 + $0x28] sm:$0xff]
    %v349 = vld [vmem:[#allocation2 + $0x30] sm:$0xff]
    %v350 = vld [vmem:[#allocation2 + $0x38] sm:$0xff]
    %v351 = vld [vmem:[#allocation2 + $0x40] sm:$0xff]
    %v352 = vld [vmem:[#allocation2 + $0x48] sm:$0xff]
    %v353 = vld [vmem:[#allocation2 + $0x50] sm:$0xff]
    %v354 = vld [vmem:[#allocation2 + $0x58] sm:$0xff]
    %v355 = vld [vmem:[#allocation2 + $0x60] sm:$0xff]
    %v356 = vld [vmem:[#allocation2 + $0x68] sm:$0xff]
    %v357 = vld [vmem:[#allocation2 + $0x70] sm:$0xff]
    %v358 = vld [vmem:[#allocation2 + $0x78] sm:$0xff]
    %v359 = vmax.f32 %v343, 0.0
    %v360 = vmax.f32 %v344, 0.0
    %v361 = vmax.f32 %v345, 0.0
    %v362 = vmax.f32 %v346, 0.0
    %v363 = vmax.f32 %v347, 0.0
    %v364 = vmax.f32 %v348, 0.0
    %v365 = vmax.f32 %v349, 0.0
    %v366 = vmax.f32 %v350, 0.0
    %v367 = vmax.f32 %v351, 0.0
    %v368 = vmax.f32 %v352, 0.0
    %v369 = vmax.f32 %v353, 0.0
    %v370 = vmax.f32 %v354, 0.0
    %v371 = vmax.f32 %v355, 0.0
    %v372 = vmax.f32 %v356, 0.0
    %v373 = vmax.f32 %v357, 0.0
    %v374 = vmax.f32 %v358, 0.0
    %375 = vst [vmem:[%s3] sm:$0xff] %v359
    %376 = vst [vmem:[%s3 + $0x8] sm:$0xff] %v360
    %377 = vst [vmem:[%s3 + $0x10] sm:$0xff] %v361
    %378 = vst [vmem:[%s3 + $0x18] sm:$0xff] %v362
    %379 = vst [vmem:[%s3 + $0x20] sm:$0xff] %v363
    %380 = vst [vmem:[%s3 + $0x28] sm:$0xff] %v364
    %381 = vst [vmem:[%s3 + $0x30] sm:$0xff] %v365
    %382 = vst [vmem:[%s3 + $0x38] sm:$0xff] %v366
    %383 = vst [vmem:[%s3 + $0x40] sm:$0xff] %v367
    %384 = vst [vmem:[%s3 + $0x48] sm:$0xff] %v368
    %385 = vst [vmem:[%s3 + $0x50] sm:$0xff] %v369
    %386 = vst [vmem:[%s3 + $0x58] sm:$0xff] %v370
    %387 = vst [vmem:[%s3 + $0x60] sm:$0xff] %v371
    %388 = vst [vmem:[%s3 + $0x68] sm:$0xff] %v372
    %389 = vst [vmem:[%s3 + $0x70] sm:$0xff] %v373
    %390 = vst [vmem:[%s3 + $0x78] sm:$0xff] %v374
  $region21: #{graph_forward.4} parent=0 // pred_fallthru
    _
  // Predicated region
  $region22: #{graph_forward.4} parent=0 // pred_check
    _
  $region23: #{graph_forward.4} parent=0 // pred_check_branch
    %392 = sbr.rel (0) target = $region25
  $region24: #{graph_forward.4} parent=0 // pred_region
    _
  $region25: #{graph_forward.4} parent=0 // pred_fallthru
    _
  // Predicated region
  $region26: #{graph_forward.4} parent=0 // pred_check
    _
  $region27: #{graph_forward.4} parent=0 // pred_check_branch
    %394 = sbr.rel (0) target = $region29
  $region28: #{graph_forward.4} parent=0 // pred_region
    _
  $region29: #{graph_forward.4} parent=0 // pred_fallthru
    _

// kernel: graph_forward.5
$region0: #{graph_forward.5}
  #allocation0 [shape = 'u32[]', space=smem, size = 0x4, offset = 0x4, fixed_abs, tag = 'smem constant byte address 0x4 - core index']
  #allocation1 [shape = 'u32[72,128]{1,0:T(1,128)}', space=vmem, size = 0x9000, scoped, tag = 'internal scratch']
  #allocation2 [shape = 'f32[128,128]{1,0:T(8,128)}', space=vmem, size = 0x10000, scoped, tag = 'scratch operand']
  %s0 = inlined_call_operand.vmem [shape: f32[128,128], index: 0, kind: input, shape index: {}]
  %s1 = inlined_call_operand.vmem [shape: bf16[128,128], index: 1, kind: input, shape index: {}]
  %s2 = inlined_call_operand.vmem [shape: bf16[128,128], index: 2, kind: input, shape index: {}]
  %s3 = inlined_call_operand.vmem [shape: f32[128,16], index: 3, kind: input, shape index: {}]
  %s4 = inlined_call_operand.vmem [shape: f32[128,128], index: 4, kind: output, shape index: {}]
  %s5 = sld [smem:[#allocation0]]
  $region34: #{graph_forward.5} parent=0
    _
  %s7 = ssub.s32 1, %s5
  %s8 = scalar_select 0, %s7, %s5
  // Predicated region
  $region2: #{graph_forward.5} parent=0 // pred_check
    _
  $region3: #{graph_forward.5} parent=0 // pred_check_branch
    %10 = sbr.rel (0) target = $region5
  $region4: #{graph_forward.5} parent=0 // pred_region
    _
  $region5: #{graph_forward.5} parent=0 // pred_fallthru
    _
  // Predicated region
  $region6: #{graph_forward.5} parent=0 // pred_check
    _
  $region7: #{graph_forward.5} parent=0 // pred_check_branch
    %12 = sbr.rel (0) target = $region9
  $region8: #{graph_forward.5} parent=0 // pred_region
    _
  $region9: #{graph_forward.5} parent=0 // pred_fallthru
    _
  // Predicated region
  $region10: #{graph_forward.5} parent=0 // pred_check
    _
  $region11: #{graph_forward.5} parent=0 // pred_check_branch
    %14 = sbr.rel (0) target = $region13
  $region12: #{graph_forward.5} parent=0 // pred_region
    _
  $region13: #{graph_forward.5} parent=0 // pred_fallthru
    _
  // Predicated region
  $region14: #{graph_forward.5} parent=0 // pred_check
    _
  $region15: #{graph_forward.5} parent=0 // pred_check_branch
    %16 = sbr.rel (0) target = $region17
  $region16: #{graph_forward.5} parent=0 // pred_region
    _
  $region17: #{graph_forward.5} parent=0 // pred_fallthru
    _
  %p17 = scmp.eq.s32.totalorder 0, 0
  // Predicated region
  $region18: #{graph_forward.5} parent=0 // pred_check
    %p18 = pneg %p17
  $region19: #{graph_forward.5} parent=0 // pred_check_branch
    %20 = sbr.rel (%p18) target = $region21
  $region20: #{graph_forward.5} parent=0 // pred_region
    %21 = vst [vmem:[#allocation2] sm:$0xff] 0.0
    %22 = vst [vmem:[#allocation2 + $0x8] sm:$0xff] 0.0
    %23 = vst [vmem:[#allocation2 + $0x10] sm:$0xff] 0.0
    %24 = vst [vmem:[#allocation2 + $0x18] sm:$0xff] 0.0
    %25 = vst [vmem:[#allocation2 + $0x20] sm:$0xff] 0.0
    %26 = vst [vmem:[#allocation2 + $0x28] sm:$0xff] 0.0
    %27 = vst [vmem:[#allocation2 + $0x30] sm:$0xff] 0.0
    %28 = vst [vmem:[#allocation2 + $0x38] sm:$0xff] 0.0
    %29 = vst [vmem:[#allocation2 + $0x40] sm:$0xff] 0.0
    %30 = vst [vmem:[#allocation2 + $0x48] sm:$0xff] 0.0
    %31 = vst [vmem:[#allocation2 + $0x50] sm:$0xff] 0.0
    %32 = vst [vmem:[#allocation2 + $0x58] sm:$0xff] 0.0
    %33 = vst [vmem:[#allocation2 + $0x60] sm:$0xff] 0.0
    %34 = vst [vmem:[#allocation2 + $0x68] sm:$0xff] 0.0
    %35 = vst [vmem:[#allocation2 + $0x70] sm:$0xff] 0.0
    %36 = vst [vmem:[#allocation2 + $0x78] sm:$0xff] 0.0
  $region21: #{graph_forward.5} parent=0 // pred_fallthru
    _
  %v37 = vld [vmem:[%s0] sm:$0xff]
  %v38 = vld [vmem:[%s0 + $0x8] sm:$0xff]
  %v39 = vld [vmem:[%s0 + $0x10] sm:$0xff]
  %v40 = vld [vmem:[%s0 + $0x18] sm:$0xff]
  %v41 = vld [vmem:[%s0 + $0x20] sm:$0xff]
  %v42 = vld [vmem:[%s0 + $0x28] sm:$0xff]
  %v43 = vld [vmem:[%s0 + $0x30] sm:$0xff]
  %v44 = vld [vmem:[%s0 + $0x38] sm:$0xff]
  %v45 = vld [vmem:[%s0 + $0x40] sm:$0xff]
  %v46 = vld [vmem:[%s0 + $0x48] sm:$0xff]
  %v47 = vld [vmem:[%s0 + $0x50] sm:$0xff]
  %v48 = vld [vmem:[%s0 + $0x58] sm:$0xff]
  %v49 = vld [vmem:[%s0 + $0x60] sm:$0xff]
  %v50 = vld [vmem:[%s0 + $0x68] sm:$0xff]
  %v51 = vld [vmem:[%s0 + $0x70] sm:$0xff]
  %v52 = vld [vmem:[%s0 + $0x78] sm:$0xff]
  %v53 = vpack.c.bf16 %v38, %v37
  %v54 = vpack.c.bf16 %v40, %v39
  %v55 = vpack.c.bf16 %v42, %v41
  %v56 = vpack.c.bf16 %v44, %v43
  %v57 = vpack.c.bf16 %v46, %v45
  %v58 = vpack.c.bf16 %v48, %v47
  %v59 = vpack.c.bf16 %v50, %v49
  %v60 = vpack.c.bf16 %v52, %v51
  %v61 = vld [vmem:[%s2] sm:$0xf]
  %v62 = vld [vmem:[%s2 + $0x4] sm:$0xf]
  %v63 = vld [vmem:[%s2 + $0x8] sm:$0xf]
  %v64 = vld [vmem:[%s2 + $0xc] sm:$0xf]
  %v65 = vld [vmem:[%s2 + $0x10] sm:$0xf]
  %v66 = vld [vmem:[%s2 + $0x14] sm:$0xf]
  %v67 = vld [vmem:[%s2 + $0x18] sm:$0xf]
  %v68 = vld [vmem:[%s2 + $0x1c] sm:$0xf]
  %v69 = vld [vmem:[%s2 + $0x20] sm:$0xf]
  %v70 = vld [vmem:[%s2 + $0x24] sm:$0xf]
  %v71 = vld [vmem:[%s2 + $0x28] sm:$0xf]
  %v72 = vld [vmem:[%s2 + $0x2c] sm:$0xf]
  %v73 = vld [vmem:[%s2 + $0x30] sm:$0xf]
  %v74 = vld [vmem:[%s2 + $0x34] sm:$0xf]
  %v75 = vld [vmem:[%s2 + $0x38] sm:$0xf]
  %v76 = vld [vmem:[%s2 + $0x3c] sm:$0xf]
  %v93 = vunpack.c.l.b16 %v61
  %v94 = vunpack.c.l.b16 %v62
  %v95 = vunpack.c.l.b16 %v63
  %v96 = vunpack.c.l.b16 %v64
  %v97 = vunpack.c.l.b16 %v65
  %v98 = vunpack.c.l.b16 %v66
  %v99 = vunpack.c.l.b16 %v67
  %v100 = vunpack.c.l.b16 %v68
  %v101 = vunpack.c.l.b16 %v69
  %v102 = vunpack.c.l.b16 %v70
  %v103 = vunpack.c.l.b16 %v71
  %v104 = vunpack.c.l.b16 %v72
  %v105 = vunpack.c.l.b16 %v73
  %v106 = vunpack.c.l.b16 %v74
  %v107 = vunpack.c.l.b16 %v75
  %v108 = vunpack.c.l.b16 %v76
  %v109 = vpack.c.b16 %v94, %v93
  %v110 = vpack.c.b16 %v96, %v95
  %v111 = vpack.c.b16 %v98, %v97
  %v112 = vpack.c.b16 %v100, %v99
  %v113 = vpack.c.b16 %v102, %v101
  %v114 = vpack.c.b16 %v104, %v103
  %v115 = vpack.c.b16 %v106, %v105
  %v116 = vpack.c.b16 %v108, %v107
  %125 = vmatpush.bf16.msra.mxu0 %v116
  %126 = vmatpush.bf16.msra.mxu0 %v115
  %127 = vmatpush.bf16.msra.mxu0 %v114
  %128 = vmatpush.bf16.msra.mxu0 %v113
  %129 = vmatpush.bf16.msra.mxu0 %v112
  %130 = vmatpush.bf16.msra.mxu0 %v111
  %131 = vmatpush.bf16.msra.mxu0 %v110
  %132 = vmatpush.bf16.msra.mxu0 %v109
  %133 = vmatmul.bf16.gmra.mxu0 %v53
  %v134 = vpop.f32.mrf.mxu0
  %v135 = vadd.f32 0.0, %v134
  %v136 = vpop.f32.mrf.mxu0
  %v137 = vadd.f32 0.0, %v136
  %138 = vmatmul.bf16.gmra.mxu0 %v54
  %v139 = vpop.f32.mrf.mxu0
  %v140 = vadd.f32 0.0, %v139
  %v141 = vpop.f32.mrf.mxu0
  %v142 = vadd.f32 0.0, %v141
  %143 = vmatmul.bf16.gmra.mxu0 %v55
  %v144 = vpop.f32.mrf.mxu0
  %v145 = vadd.f32 0.0, %v144
  %v146 = vpop.f32.mrf.mxu0
  %v147 = vadd.f32 0.0, %v146
  %148 = vmatmul.bf16.gmra.mxu0 %v56
  %v149 = vpop.f32.mrf.mxu0
  %v150 = vadd.f32 0.0, %v149
  %v151 = vpop.f32.mrf.mxu0
  %v152 = vadd.f32 0.0, %v151
  %153 = vmatmul.bf16.gmra.mxu0 %v57
  %v154 = vpop.f32.mrf.mxu0
  %v155 = vadd.f32 0.0, %v154
  %v156 = vpop.f32.mrf.mxu0
  %v157 = vadd.f32 0.0, %v156
  %158 = vmatmul.bf16.gmra.mxu0 %v58
  %v159 = vpop.f32.mrf.mxu0
  %v160 = vadd.f32 0.0, %v159
  %v161 = vpop.f32.mrf.mxu0
  %v162 = vadd.f32 0.0, %v161
  %163 = vmatmul.bf16.gmra.mxu0 %v59
  %v164 = vpop.f32.mrf.mxu0
  %v165 = vadd.f32 0.0, %v164
  %v166 = vpop.f32.mrf.mxu0
  %v167 = vadd.f32 0.0, %v166
  %168 = vmatmul.bf16.gmra.mxu0 %v60
  %v169 = vpop.f32.mrf.mxu0
  %v170 = vadd.f32 0.0, %v169
  %v171 = vpop.f32.mrf.mxu0
  %v172 = vadd.f32 0.0, %v171
  %173 = vdwg.mxu0
  %v174 = vld [vmem:[#allocation2] sm:$0xff]
  %v175 = vld [vmem:[#allocation2 + $0x8] sm:$0xff]
  %v176 = vld [vmem:[#allocation2 + $0x10] sm:$0xff]
  %v177 = vld [vmem:[#allocation2 + $0x18] sm:$0xff]
  %v178 = vld [vmem:[#allocation2 + $0x20] sm:$0xff]
  %v179 = vld [vmem:[#allocation2 + $0x28] sm:$0xff]
  %v180 = vld [vmem:[#allocation2 + $0x30] sm:$0xff]
  %v181 = vld [vmem:[#allocation2 + $0x38] sm:$0xff]
  %v182 = vld [vmem:[#allocation2 + $0x40] sm:$0xff]
  %v183 = vld [vmem:[#allocation2 + $0x48] sm:$0xff]
  %v184 = vld [vmem:[#allocation2 + $0x50] sm:$0xff]
  %v185 = vld [vmem:[#allocation2 + $0x58] sm:$0xff]
  %v186 = vld [vmem:[#allocation2 + $0x60] sm:$0xff]
  %v187 = vld [vmem:[#allocation2 + $0x68] sm:$0xff]
  %v188 = vld [vmem:[#allocation2 + $0x70] sm:$0xff]
  %v189 = vld [vmem:[#allocation2 + $0x78] sm:$0xff]
  %v190 = vld [vmem:[%s1] sm:$0xf]
  %v191 = vld [vmem:[%s1 + $0x4] sm:$0xf]
  %v192 = vld [vmem:[%s1 + $0x8] sm:$0xf]
  %v193 = vld [vmem:[%s1 + $0xc] sm:$0xf]
  %v194 = vld [vmem:[%s1 + $0x10] sm:$0xf]
  %v195 = vld [vmem:[%s1 + $0x14] sm:$0xf]
  %v196 = vld [vmem:[%s1 + $0x18] sm:$0xf]
  %v197 = vld [vmem:[%s1 + $0x1c] sm:$0xf]
  %v198 = vld [vmem:[%s1 + $0x20] sm:$0xf]
  %v199 = vld [vmem:[%s1 + $0x24] sm:$0xf]
  %v200 = vld [vmem:[%s1 + $0x28] sm:$0xf]
  %v201 = vld [vmem:[%s1 + $0x2c] sm:$0xf]
  %v202 = vld [vmem:[%s1 + $0x30] sm:$0xf]
  %v203 = vld [vmem:[%s1 + $0x34] sm:$0xf]
  %v204 = vld [vmem:[%s1 + $0x38] sm:$0xf]
  %v205 = vld [vmem:[%s1 + $0x3c] sm:$0xf]
  %v206 = vpack.c.bf16 %v137, %v135
  %v207 = vpack.c.bf16 %v142, %v140
  %v208 = vpack.c.bf16 %v147, %v145
  %v209 = vpack.c.bf16 %v152, %v150
  %v210 = vpack.c.bf16 %v157, %v155
  %v211 = vpack.c.bf16 %v162, %v160
  %v212 = vpack.c.bf16 %v167, %v165
  %v213 = vpack.c.bf16 %v172, %v170
  %v230 = vunpack.c.l.b16 %v190
  %v231 = vunpack.c.l.b16 %v191
  %v232 = vunpack.c.l.b16 %v192
  %v233 = vunpack.c.l.b16 %v193
  %v234 = vunpack.c.l.b16 %v194
  %v235 = vunpack.c.l.b16 %v195
  %v236 = vunpack.c.l.b16 %v196
  %v237 = vunpack.c.l.b16 %v197
  %v238 = vunpack.c.l.b16 %v198
  %v239 = vunpack.c.l.b16 %v199
  %v240 = vunpack.c.l.b16 %v200
  %v241 = vunpack.c.l.b16 %v201
  %v242 = vunpack.c.l.b16 %v202
  %v243 = vunpack.c.l.b16 %v203
  %v244 = vunpack.c.l.b16 %v204
  %v245 = vunpack.c.l.b16 %v205
  %v246 = vpack.c.b16 %v231, %v230
  %v247 = vpack.c.b16 %v233, %v232
  %v248 = vpack.c.b16 %v235, %v234
  %v249 = vpack.c.b16 %v237, %v236
  %v250 = vpack.c.b16 %v239, %v238
  %v251 = vpack.c.b16 %v241, %v240
  %v252 = vpack.c.b16 %v243, %v242
  %v253 = vpack.c.b16 %v245, %v244
  %262 = vmatpush.bf16.msra.mxu0 %v213
  %263 = vmatpush.bf16.msra.mxu0 %v212
  %264 = vmatpush.bf16.msra.mxu0 %v211
  %265 = vmatpush.bf16.msra.mxu0 %v210
  %266 = vmatpush.bf16.msra.mxu0 %v209
  %267 = vmatpush.bf16.msra.mxu0 %v208
  %268 = vmatpush.bf16.msra.mxu0 %v207
  %269 = vmatpush.bf16.msra.mxu0 %v206
  %270 = vmatmul.bf16.gmra.mxu0 %v246
  %v271 = vpop.f32.mrf.mxu0
  %v272 = vadd.f32 0.0, %v271
  %v273 = vpop.f32.mrf.mxu0
  %v274 = vadd.f32 0.0, %v273
  %275 = vmatmul.bf16.gmra.mxu0 %v247
  %v276 = vpop.f32.mrf.mxu0
  %v277 = vadd.f32 0.0, %v276
  %v278 = vpop.f32.mrf.mxu0
  %v279 = vadd.f32 0.0, %v278
  %280 = vmatmul.bf16.gmra.mxu0 %v248
  %v281 = vpop.f32.mrf.mxu0
  %v282 = vadd.f32 0.0, %v281
  %v283 = vpop.f32.mrf.mxu0
  %v284 = vadd.f32 0.0, %v283
  %285 = vmatmul.bf16.gmra.mxu0 %v249
  %v286 = vpop.f32.mrf.mxu0
  %v287 = vadd.f32 0.0, %v286
  %v288 = vpop.f32.mrf.mxu0
  %v289 = vadd.f32 0.0, %v288
  %290 = vmatmul.bf16.gmra.mxu0 %v250
  %v291 = vpop.f32.mrf.mxu0
  %v292 = vadd.f32 0.0, %v291
  %v293 = vpop.f32.mrf.mxu0
  %v294 = vadd.f32 0.0, %v293
  %295 = vmatmul.bf16.gmra.mxu0 %v251
  %v296 = vpop.f32.mrf.mxu0
  %v297 = vadd.f32 0.0, %v296
  %v298 = vpop.f32.mrf.mxu0
  %v299 = vadd.f32 0.0, %v298
  %300 = vmatmul.bf16.gmra.mxu0 %v252
  %v301 = vpop.f32.mrf.mxu0
  %v302 = vadd.f32 0.0, %v301
  %v303 = vpop.f32.mrf.mxu0
  %v304 = vadd.f32 0.0, %v303
  %305 = vmatmul.bf16.gmra.mxu0 %v253
  %v306 = vpop.f32.mrf.mxu0
  %v307 = vadd.f32 0.0, %v306
  %v308 = vpop.f32.mrf.mxu0
  %v309 = vadd.f32 0.0, %v308
  %310 = vdwg.mxu0
  %v311 = vadd.f32 %v174, %v272
  %v312 = vadd.f32 %v175, %v274
  %v313 = vadd.f32 %v176, %v277
  %v314 = vadd.f32 %v177, %v279
  %v315 = vadd.f32 %v178, %v282
  %v316 = vadd.f32 %v179, %v284
  %v317 = vadd.f32 %v180, %v287
  %v318 = vadd.f32 %v181, %v289
  %v319 = vadd.f32 %v182, %v292
  %v320 = vadd.f32 %v183, %v294
  %v321 = vadd.f32 %v184, %v297
  %v322 = vadd.f32 %v185, %v299
  %v323 = vadd.f32 %v186, %v302
  %v324 = vadd.f32 %v187, %v304
  %v325 = vadd.f32 %v188, %v307
  %v326 = vadd.f32 %v189, %v309
  %327 = vst [vmem:[#allocation2] sm:$0xff] %v311
  %328 = vst [vmem:[#allocation2 + $0x8] sm:$0xff] %v312
  %329 = vst [vmem:[#allocation2 + $0x10] sm:$0xff] %v313
  %330 = vst [vmem:[#allocation2 + $0x18] sm:$0xff] %v314
  %331 = vst [vmem:[#allocation2 + $0x20] sm:$0xff] %v315
  %332 = vst [vmem:[#allocation2 + $0x28] sm:$0xff] %v316
  %333 = vst [vmem:[#allocation2 + $0x30] sm:$0xff] %v317
  %334 = vst [vmem:[#allocation2 + $0x38] sm:$0xff] %v318
  %335 = vst [vmem:[#allocation2 + $0x40] sm:$0xff] %v319
  %336 = vst [vmem:[#allocation2 + $0x48] sm:$0xff] %v320
  %337 = vst [vmem:[#allocation2 + $0x50] sm:$0xff] %v321
  %338 = vst [vmem:[#allocation2 + $0x58] sm:$0xff] %v322
  %339 = vst [vmem:[#allocation2 + $0x60] sm:$0xff] %v323
  %340 = vst [vmem:[#allocation2 + $0x68] sm:$0xff] %v324
  %341 = vst [vmem:[#allocation2 + $0x70] sm:$0xff] %v325
  %342 = vst [vmem:[#allocation2 + $0x78] sm:$0xff] %v326
  // Predicated region
  $region22: #{graph_forward.5} parent=0 // pred_check
    %p343 = pneg %p17
  $region23: #{graph_forward.5} parent=0 // pred_check_branch
    %345 = sbr.rel (%p343) target = $region25
  $region24: #{graph_forward.5} parent=0 // pred_region
    %v346 = vld [vmem:[#allocation2] sm:$0xff]
    %v347 = vld [vmem:[#allocation2 + $0x8] sm:$0xff]
    %v348 = vld [vmem:[#allocation2 + $0x10] sm:$0xff]
    %v349 = vld [vmem:[#allocation2 + $0x18] sm:$0xff]
    %v350 = vld [vmem:[#allocation2 + $0x20] sm:$0xff]
    %v351 = vld [vmem:[#allocation2 + $0x28] sm:$0xff]
    %v352 = vld [vmem:[#allocation2 + $0x30] sm:$0xff]
    %v353 = vld [vmem:[#allocation2 + $0x38] sm:$0xff]
    %v354 = vld [vmem:[#allocation2 + $0x40] sm:$0xff]
    %v355 = vld [vmem:[#allocation2 + $0x48] sm:$0xff]
    %v356 = vld [vmem:[#allocation2 + $0x50] sm:$0xff]
    %v357 = vld [vmem:[#allocation2 + $0x58] sm:$0xff]
    %v358 = vld [vmem:[#allocation2 + $0x60] sm:$0xff]
    %v359 = vld [vmem:[#allocation2 + $0x68] sm:$0xff]
    %v360 = vld [vmem:[#allocation2 + $0x70] sm:$0xff]
    %v361 = vld [vmem:[#allocation2 + $0x78] sm:$0xff]
    %v362 = vld [vmem:[%s3] sm:$0xff]
    %v363 = vld [vmem:[%s3 + $0x8] sm:$0xff]
    %v364 = vld [vmem:[%s3 + $0x10] sm:$0xff]
    %v365 = vld [vmem:[%s3 + $0x18] sm:$0xff]
    %v366 = vld [vmem:[%s3 + $0x20] sm:$0xff]
    %v367 = vld [vmem:[%s3 + $0x28] sm:$0xff]
    %v368 = vld [vmem:[%s3 + $0x30] sm:$0xff]
    %v369 = vld [vmem:[%s3 + $0x38] sm:$0xff]
    %v370 = vld [vmem:[%s3 + $0x40] sm:$0xff]
    %v371 = vld [vmem:[%s3 + $0x48] sm:$0xff]
    %v372 = vld [vmem:[%s3 + $0x50] sm:$0xff]
    %v373 = vld [vmem:[%s3 + $0x58] sm:$0xff]
    %v374 = vld [vmem:[%s3 + $0x60] sm:$0xff]
    %v375 = vld [vmem:[%s3 + $0x68] sm:$0xff]
    %v376 = vld [vmem:[%s3 + $0x70] sm:$0xff]
    %v377 = vld [vmem:[%s3 + $0x78] sm:$0xff]
    %v378 = vmul.f32 %v346, 1.442695
    %v379 = vpow.pop %v378
    %v380 = vmul.f32 %v347, 1.442695
    %v381 = vpow.pop %v380
    %v382 = vmul.f32 %v348, 1.442695
    %v383 = vpow.pop %v382
    %v384 = vmul.f32 %v349, 1.442695
    %v385 = vpow.pop %v384
    %v386 = vmul.f32 %v350, 1.442695
    %v387 = vpow.pop %v386
    %v388 = vmul.f32 %v351, 1.442695
    %v389 = vpow.pop %v388
    %v390 = vmul.f32 %v352, 1.442695
    %v391 = vpow.pop %v390
    %v392 = vmul.f32 %v353, 1.442695
    %v393 = vpow.pop %v392
    %v394 = vmul.f32 %v354, 1.442695
    %v395 = vpow.pop %v394
    %v396 = vmul.f32 %v355, 1.442695
    %v397 = vpow.pop %v396
    %v398 = vmul.f32 %v356, 1.442695
    %v399 = vpow.pop %v398
    %v400 = vmul.f32 %v357, 1.442695
    %v401 = vpow.pop %v400
    %v402 = vmul.f32 %v358, 1.442695
    %v403 = vpow.pop %v402
    %v404 = vmul.f32 %v359, 1.442695
    %v405 = vpow.pop %v404
    %v406 = vmul.f32 %v360, 1.442695
    %v407 = vpow.pop %v406
    %v408 = vmul.f32 %v361, 1.442695
    %v409 = vpow.pop %v408
    %426 = vrot.lane.b32.xlu0 %v379, 112
    %v427 = vpop.permute.xlu0 %426
    %428 = vrot.lane.b32.xlu0 %v381, 112
    %v429 = vpop.permute.xlu0 %428
    %430 = vrot.lane.b32.xlu0 %v383, 112
    %v431 = vpop.permute.xlu0 %430
    %432 = vrot.lane.b32.xlu0 %v385, 112
    %v433 = vpop.permute.xlu0 %432
    %434 = vrot.lane.b32.xlu0 %v387, 112
    %v435 = vpop.permute.xlu0 %434
    %436 = vrot.lane.b32.xlu0 %v389, 112
    %v437 = vpop.permute.xlu0 %436
    %438 = vrot.lane.b32.xlu0 %v391, 112
    %v439 = vpop.permute.xlu0 %438
    %440 = vrot.lane.b32.xlu0 %v393, 112
    %v441 = vpop.permute.xlu0 %440
    %442 = vrot.lane.b32.xlu0 %v395, 112
    %v443 = vpop.permute.xlu0 %442
    %444 = vrot.lane.b32.xlu0 %v397, 112
    %v445 = vpop.permute.xlu0 %444
    %446 = vrot.lane.b32.xlu0 %v399, 112
    %v447 = vpop.permute.xlu0 %446
    %448 = vrot.lane.b32.xlu0 %v401, 112
    %v449 = vpop.permute.xlu0 %448
    %450 = vrot.lane.b32.xlu0 %v403, 112
    %v451 = vpop.permute.xlu0 %450
    %452 = vrot.lane.b32.xlu0 %v405, 112
    %v453 = vpop.permute.xlu0 %452
    %454 = vrot.lane.b32.xlu0 %v407, 112
    %v455 = vpop.permute.xlu0 %454
    %456 = vrot.lane.b32.xlu0 %v409, 112
    %v457 = vpop.permute.xlu0 %456
    %v474 = vmul.f32 %v362, %v427
    %v475 = vmul.f32 %v363, %v429
    %v476 = vmul.f32 %v364, %v431
    %v477 = vmul.f32 %v365, %v433
    %v478 = vmul.f32 %v366, %v435
    %v479 = vmul.f32 %v367, %v437
    %v480 = vmul.f32 %v368, %v439
    %v481 = vmul.f32 %v369, %v441
    %v482 = vmul.f32 %v370, %v443
    %v483 = vmul.f32 %v371, %v445
    %v484 = vmul.f32 %v372, %v447
    %v485 = vmul.f32 %v373, %v449
    %v486 = vmul.f32 %v374, %v451
    %v487 = vmul.f32 %v375, %v453
    %v488 = vmul.f32 %v376, %v455
    %v489 = vmul.f32 %v377, %v457
    %v490 = vadd.f32 %v474, %v346
    %v491 = vadd.f32 %v475, %v347
    %v492 = vadd.f32 %v476, %v348
    %v493 = vadd.f32 %v477, %v349
    %v494 = vadd.f32 %v478, %v350
    %v495 = vadd.f32 %v479, %v351
    %v496 = vadd.f32 %v480, %v352
    %v497 = vadd.f32 %v481, %v353
    %v498 = vadd.f32 %v482, %v354
    %v499 = vadd.f32 %v483, %v355
    %v500 = vadd.f32 %v484, %v356
    %v501 = vadd.f32 %v485, %v357
    %v502 = vadd.f32 %v486, %v358
    %v503 = vadd.f32 %v487, %v359
    %v504 = vadd.f32 %v488, %v360
    %v505 = vadd.f32 %v489, %v361
    %522 = vrot.lane.b32.xlu0 %v490, 32
    %v523 = vpop.permute.xlu0 %522
    %524 = vrot.lane.b32.xlu0 %v491, 32
    %v525 = vpop.permute.xlu0 %524
    %526 = vrot.lane.b32.xlu0 %v492, 32
    %v527 = vpop.permute.xlu0 %526
    %528 = vrot.lane.b32.xlu0 %v493, 32
    %v529 = vpop.permute.xlu0 %528
    %530 = vrot.lane.b32.xlu0 %v494, 32
    %v531 = vpop.permute.xlu0 %530
    %532 = vrot.lane.b32.xlu0 %v495, 32
    %v533 = vpop.permute.xlu0 %532
    %534 = vrot.lane.b32.xlu0 %v496, 32
    %v535 = vpop.permute.xlu0 %534
    %536 = vrot.lane.b32.xlu0 %v497, 32
    %v537 = vpop.permute.xlu0 %536
    %538 = vrot.lane.b32.xlu0 %v498, 32
    %v539 = vpop.permute.xlu0 %538
    %540 = vrot.lane.b32.xlu0 %v499, 32
    %v541 = vpop.permute.xlu0 %540
    %542 = vrot.lane.b32.xlu0 %v500, 32
    %v543 = vpop.permute.xlu0 %542
    %544 = vrot.lane.b32.xlu0 %v501, 32
    %v545 = vpop.permute.xlu0 %544
    %546 = vrot.lane.b32.xlu0 %v502, 32
    %v547 = vpop.permute.xlu0 %546
    %548 = vrot.lane.b32.xlu0 %v503, 32
    %v549 = vpop.permute.xlu0 %548
    %550 = vrot.lane.b32.xlu0 %v504, 32
    %v551 = vpop.permute.xlu0 %550
    %552 = vrot.lane.b32.xlu0 %v505, 32
    %v553 = vpop.permute.xlu0 %552
    %vm570 = vcmask 261120
    %v571 = vsel %vm570, %v346, %v523
    %v572 = vsel %vm570, %v347, %v525
    %v573 = vsel %vm570, %v348, %v527
    %v574 = vsel %vm570, %v349, %v529
    %v575 = vsel %vm570, %v350, %v531
    %v576 = vsel %vm570, %v351, %v533
    %v577 = vsel %vm570, %v352, %v535
    %v578 = vsel %vm570, %v353, %v537
    %v579 = vsel %vm570, %v354, %v539
    %v580 = vsel %vm570, %v355, %v541
    %v581 = vsel %vm570, %v356, %v543
    %v582 = vsel %vm570, %v357, %v545
    %v583 = vsel %vm570, %v358, %v547
    %v584 = vsel %vm570, %v359, %v549
    %v585 = vsel %vm570, %v360, %v551
    %v586 = vsel %vm570, %v361, %v553
    %vm587 = vcmask 392192
    %v588 = vsel %vm587, %v571, 0.0
    %v589 = vsel %vm587, %v572, 0.0
    %v590 = vsel %vm587, %v573, 0.0
    %v591 = vsel %vm587, %v574, 0.0
    %v592 = vsel %vm587, %v575, 0.0
    %v593 = vsel %vm587, %v576, 0.0
    %v594 = vsel %vm587, %v577, 0.0
    %v595 = vsel %vm587, %v578, 0.0
    %v596 = vsel %vm587, %v579, 0.0
    %v597 = vsel %vm587, %v580, 0.0
    %v598 = vsel %vm587, %v581, 0.0
    %v599 = vsel %vm587, %v582, 0.0
    %v600 = vsel %vm587, %v583, 0.0
    %v601 = vsel %vm587, %v584, 0.0
    %v602 = vsel %vm587, %v585, 0.0
    %v603 = vsel %vm587, %v586, 0.0
    %604 = vst [vmem:[%s4] sm:$0xff] %v588
    %605 = vst [vmem:[%s4 + $0x8] sm:$0xff] %v589
    %606 = vst [vmem:[%s4 + $0x10] sm:$0xff] %v590
    %607 = vst [vmem:[%s4 + $0x18] sm:$0xff] %v591
    %608 = vst [vmem:[%s4 + $0x20] sm:$0xff] %v592
    %609 = vst [vmem:[%s4 + $0x28] sm:$0xff] %v593
    %610 = vst [vmem:[%s4 + $0x30] sm:$0xff] %v594
    %611 = vst [vmem:[%s4 + $0x38] sm:$0xff] %v595
    %612 = vst [vmem:[%s4 + $0x40] sm:$0xff] %v596
    %613 = vst [vmem:[%s4 + $0x48] sm:$0xff] %v597
    %614 = vst [vmem:[%s4 + $0x50] sm:$0xff] %v598
    %615 = vst [vmem:[%s4 + $0x58] sm:$0xff] %v599
    %616 = vst [vmem:[%s4 + $0x60] sm:$0xff] %v600
    %617 = vst [vmem:[%s4 + $0x68] sm:$0xff] %v601
    %618 = vst [vmem:[%s4 + $0x70] sm:$0xff] %v602
    %619 = vst [vmem:[%s4 + $0x78] sm:$0xff] %v603
  $region25: #{graph_forward.5} parent=0 // pred_fallthru
    _
  // Predicated region
  $region26: #{graph_forward.5} parent=0 // pred_check
    _
  $region27: #{graph_forward.5} parent=0 // pred_check_branch
    %621 = sbr.rel (0) target = $region29
  $region28: #{graph_forward.5} parent=0 // pred_region
    _
  $region29: #{graph_forward.5} parent=0 // pred_fallthru
    _
  // Predicated region
  $region30: #{graph_forward.5} parent=0 // pred_check
    _
  $region31: #{graph_forward.5} parent=0 // pred_check_branch
    %623 = sbr.rel (0) target = $region33
  $region32: #{graph_forward.5} parent=0 // pred_region
    _
  $region33: #{graph_forward.5} parent=0 // pred_fallthru
    _

</llo_original>
